<compile_context>
chip_gen: v7x
topology: tpu7x:2x2x1
jax: 0.10.0
libtpu: 0.0.40
codegen_flags: <defaults>
</compile_context>

<pallas_src>
import functools
import math

import jax
import jax.numpy as jnp
from jax.experimental import pallas as pl
from jax.experimental.pallas import tpu as pltpu


_INV_SQRT2 = 1.0 / math.sqrt(2.0)


# ---------------------------------------------------------------------------
# Small helpers
# ---------------------------------------------------------------------------
def _round_up(x, m):
    return ((x + m - 1) // m) * m


def _pad_rows(a, new_rows):
    if a.shape[0] == new_rows:
        return a
    return jnp.pad(a, ((0, new_rows - a.shape[0]), (0, 0)))


def _pad_cols(a, new_cols):
    if a.shape[-1] == new_cols:
        return a
    widths = [(0, 0)] * (a.ndim - 1) + [(0, new_cols - a.shape[-1])]
    return jnp.pad(a, widths)


def _pick_row_tile(M, pref):
    """Prefer a row tile that divides M (avoids a jnp.pad HBM pass)."""
    pref = max(8, pref - pref % 8)
    if M % 8 == 0:
        t = min(pref, M)
        while M % t:
            t -= 8
        if t == M or t >= max(8, min(pref, M) // 4):
            return t
    return min(pref, _round_up(M, 8))


def _pick_col_tile(N, pref):
    """Return (tile, padded_N); avoid padding when N is small or 128-aligned."""
    pref = max(128, pref - pref % 128)
    if N % 128 == 0:
        t = min(pref, N)
        while N % t:
            t -= 128
        return t, N
    if N <= 2048:
        return N, N                       # full-dim block: legal and pad-free
    t = min(pref, _round_up(N, 128))
    return t, _round_up(N, t)


def _vmem_limit(bytes_needed):
    # >= default scoped limits everywhere, <= physical VMEM on v5e/v6e/v7x.
    return int(min(max(int(bytes_needed) + (4 << 20), 32 << 20), 64 << 20))


# ---------------------------------------------------------------------------
# Fused LayerNorm + Linear   (ln_1 -> c_attn,  ln_f -> lm_head)
# ---------------------------------------------------------------------------
def _ln_linear_kernel(x_ref, gamma_ref, beta_ref, w_ref, bias_ref, o_ref, xn_ref):
    # xn_ref: (tm, K) bf16 scratch -- LN computed once per row tile (j == 0),
    # reused for every output-column tile j (column axis is "arbitrary").
    @pl.when(pl.program_id(1) == 0)
    def _():
        xf = x_ref[...].astype(jnp.float32)
        mean = jnp.mean(xf, axis=-1, keepdims=True)
        var = jnp.mean(jnp.square(xf - mean), axis=-1, keepdims=True)
        xn = (xf - mean) * jax.lax.rsqrt(var + 1e-5)
        xn = xn * gamma_ref[...].astype(jnp.float32) + beta_ref[...].astype(jnp.float32)
        xn_ref[...] = xn.astype(xn_ref.dtype)

    acc = jnp.dot(xn_ref[...], w_ref[...], preferred_element_type=jnp.float32)
    o_ref[...] = (acc + bias_ref[...].astype(jnp.float32)).astype(o_ref.dtype)


def ln_linear(x, gamma, beta, w, b, *, out_dtype=None, tile_m=512, tile_n=512):
    """out = LayerNorm(x) @ w + b.   x: (..., K) f32; w: (K, N) bf16; b: (N,) f32."""
    orig_shape = x.shape
    K = orig_shape[-1]
    N = w.shape[1]
    out_dtype = out_dtype if out_dtype is not None else x.dtype

    x2 = x.reshape(-1, K)
    M = x2.shape[0]
    tm = _pick_row_tile(M, tile_m)
    Mp = _round_up(M, tm)
    x2 = _pad_rows(x2, Mp)
    tn, Np = _pick_col_tile(N, tile_n)
    wp = _pad_cols(w, Np)
    bp = _pad_cols(b.reshape(1, N), Np)

    xb = jnp.dtype(x2.dtype).itemsize
    wb = jnp.dtype(wp.dtype).itemsize
    ob = jnp.dtype(out_dtype).itemsize
    block_bytes = tm * K * xb + K * tn * wb + tm * tn * ob + tn * 4 + 2 * K * 4
    vmem = _vmem_limit(2 * block_bytes + tm * K * 2)

    cost = pl.CostEstimate(
        flops=int(2 * Mp * K * Np + 10 * Mp * K),
        transcendentals=int(Mp),
        bytes_accessed=int(Mp * K * xb + K * Np * wb + Mp * Np * ob),
    )

    out = pl.pallas_call(
        _ln_linear_kernel,
        out_shape=jax.ShapeDtypeStruct((Mp, Np), out_dtype),
        grid_spec=pltpu.PrefetchScalarGridSpec(
            num_scalar_prefetch=0,
            grid=(Mp // tm, Np // tn),
            in_specs=[
                pl.BlockSpec((tm, K), lambda i, j: (i, 0)),
                pl.BlockSpec((1, K), lambda i, j: (0, 0)),
                pl.BlockSpec((1, K), lambda i, j: (0, 0)),
                pl.BlockSpec((K, tn), lambda i, j: (0, j)),
                pl.BlockSpec((1, tn), lambda i, j: (0, j)),
            ],
            out_specs=pl.BlockSpec((tm, tn), lambda i, j: (i, j)),
            scratch_shapes=[pltpu.VMEM((tm, K), jnp.bfloat16)],
        ),
        compiler_params=pltpu.CompilerParams(
            dimension_semantics=("parallel", "arbitrary"),
            vmem_limit_bytes=vmem,
        ),
        cost_estimate=cost,
    )(x2, gamma.reshape(1, K), beta.reshape(1, K), wp, bp)
    return out[:M, :N].reshape(*orig_shape[:-1], N)


# ---------------------------------------------------------------------------
# Causal self-attention core: consumes fused qkv (B, T, 3H), writes (B, T, H)
# ---------------------------------------------------------------------------
def _attn_kernel(qblk_ref, kv_ref, o_ref, *, num_heads, hidden):
    H = hidden
    dh = H // num_heads
    tq = qblk_ref.shape[1]
    T = kv_ref.shape[1]
    scale = 1.0 / math.sqrt(dh)

    qrows = qblk_ref[0]                       # (tq, 3H) bf16 -- q rows of this block
    kvall = kv_ref[0]                         # (T, 3H)  bf16 -- full sequence
    q = qrows[:, 0:H]
    k = kvall[:, H:2 * H]
    v = kvall[:, 2 * H:3 * H]

    q0 = pl.program_id(1) * tq
    row = q0 + jax.lax.broadcasted_iota(jnp.int32, (tq, T), 0)
    col = jax.lax.broadcasted_iota(jnp.int32, (tq, T), 1)
    causal = col <= row

    # Per-head 2D matmuls (bf16 operands, f32 accumulation); softmax in f32;
    # probabilities cast back to bf16 for the PV matmul.
    heads = []
    for h in range(num_heads):
        sl = slice(h * dh, (h + 1) * dh)
        s = jax.lax.dot_general(q[:, sl], k[:, sl],
                                (((1,), (1,)), ((), ())),
                                preferred_element_type=jnp.float32) * scale
        s = jnp.where(causal, s, -1e30)
        s = s - jnp.max(s, axis=-1, keepdims=True)
        p = jnp.exp(s)
        p = p / jnp.sum(p, axis=-1, keepdims=True)
        heads.append(jnp.dot(p.astype(v.dtype), v[:, sl],
                             preferred_element_type=jnp.float32))

    # Single lane-dense (tq, H) store (no per-head masked partial stores).
    o_ref[0] = jnp.concatenate(heads, axis=-1).astype(o_ref.dtype)


def _pick_q_tile(T, pref=256):
    for t in (pref, 128):
        if t <= T and T % t == 0:
            return t
    return T


def causal_attention(qkv, num_heads):
    """qkv: (B, T, 3H) bf16 -> y: (B, T, H) bf16 (heads already merged, lane-dense)."""
    B, T, threeH = qkv.shape
    H = threeH // 3
    dh = H // num_heads
    tq = _pick_q_tile(T)
    nq = T // tq

    itb = jnp.dtype(qkv.dtype).itemsize
    block_bytes = (tq * threeH + T * threeH + tq * H) * itb
    scores_bytes = num_heads * tq * T * 4
    vmem = _vmem_limit(2 * block_bytes + 2 * scores_bytes)

    cost = pl.CostEstimate(
        flops=int(4 * B * num_heads * T * T * dh),
        transcendentals=int(B * num_heads * T * T),
        bytes_accessed=int(2 * B * T * threeH * itb + B * T * H * itb),
    )

    kernel = functools.partial(_attn_kernel, num_heads=num_heads, hidden=H)
    return pl.pallas_call(
        kernel,
        out_shape=jax.ShapeDtypeStruct((B, T, H), jnp.bfloat16),
        grid_spec=pltpu.PrefetchScalarGridSpec(
            num_scalar_prefetch=0,
            grid=(B, nq),
            in_specs=[
                pl.BlockSpec((1, tq, threeH), lambda b, qi: (b, qi, 0)),  # q rows
                pl.BlockSpec((1, T, threeH), lambda b, qi: (b, 0, 0)),    # full kv
            ],
            out_specs=pl.BlockSpec((1, tq, H), lambda b, qi: (b, qi, 0)),
        ),
        compiler_params=pltpu.CompilerParams(
            dimension_semantics=("parallel", "parallel"),
            vmem_limit_bytes=vmem,
        ),
        cost_estimate=cost,
    )(qkv, qkv)


# ---------------------------------------------------------------------------
# Linear + residual add  (attention c_proj:  x = resid + y @ W + b)
# ---------------------------------------------------------------------------
def _linear_resid_kernel(y_ref, w_ref, bias_ref, r_ref, o_ref):
    acc = jnp.dot(y_ref[...], w_ref[...], preferred_element_type=jnp.float32)
    o_ref[...] = (r_ref[...].astype(jnp.float32) + acc
                  + bias_ref[...].astype(jnp.float32)).astype(o_ref.dtype)


def linear_residual(y, w, b, resid, *, tile_m=512, tile_n=512):
    """resid + y @ w + b.   y: (..., K) bf16; w: (K, N) bf16; resid: (..., N) f32."""
    orig_shape = resid.shape
    K = y.shape[-1]
    N = w.shape[1]

    y2 = y.reshape(-1, K)
    r2 = resid.reshape(-1, N)
    M = y2.shape[0]
    tm = _pick_row_tile(M, tile_m)
    Mp = _round_up(M, tm)
    y2 = _pad_rows(y2, Mp)
    r2 = _pad_rows(r2, Mp)
    tn, Np = _pick_col_tile(N, tile_n)
    wp = _pad_cols(w, Np)
    bp = _pad_cols(b.reshape(1, N), Np)
    r2 = _pad_cols(r2, Np)

    yb = jnp.dtype(y2.dtype).itemsize
    wb = jnp.dtype(wp.dtype).itemsize
    rb = jnp.dtype(r2.dtype).itemsize
    block_bytes = tm * K * yb + K * tn * wb + tm * tn * (rb + 4) + tn * 4
    vmem = _vmem_limit(2 * block_bytes)

    cost = pl.CostEstimate(
        flops=int(2 * Mp * K * Np + Mp * Np),
        transcendentals=0,
        bytes_accessed=int(Mp * K * yb + K * Np * wb + 2 * Mp * Np * rb),
    )

    out = pl.pallas_call(
        _linear_resid_kernel,
        out_shape=jax.ShapeDtypeStruct((Mp, Np), resid.dtype),
        grid_spec=pltpu.PrefetchScalarGridSpec(
            num_scalar_prefetch=0,
            grid=(Mp // tm, Np // tn),
            in_specs=[
                pl.BlockSpec((tm, K), lambda i, j: (i, 0)),
                pl.BlockSpec((K, tn), lambda i, j: (0, j)),
                pl.BlockSpec((1, tn), lambda i, j: (0, j)),
                pl.BlockSpec((tm, tn), lambda i, j: (i, j)),
            ],
            out_specs=pl.BlockSpec((tm, tn), lambda i, j: (i, j)),
        ),
        compiler_params=pltpu.CompilerParams(
            dimension_semantics=("parallel", "parallel"),
            vmem_limit_bytes=vmem,
        ),
        cost_estimate=cost,
    )(y2, wp, bp, r2)
    return out[:M, :N].reshape(orig_shape)


# ---------------------------------------------------------------------------
# Fused ln_2 + MLP (fc -> GELU -> c_proj) + residual add
# ---------------------------------------------------------------------------
def _mlp_kernel(x_ref, gamma_ref, beta_ref, w1_ref, b1_ref, w2_ref, b2_ref,
                o_ref, acc_ref, xn_ref):
    j = pl.program_id(1)

    @pl.when(j == 0)
    def _init():
        xf = x_ref[...].astype(jnp.float32)
        mean = jnp.mean(xf, axis=-1, keepdims=True)
        var = jnp.mean(jnp.square(xf - mean), axis=-1, keepdims=True)
        xn = (xf - mean) * jax.lax.rsqrt(var + 1e-5)
        xn = xn * gamma_ref[...].astype(jnp.float32) + beta_ref[...].astype(jnp.float32)
        xn_ref[...] = xn.astype(xn_ref.dtype)
        acc_ref[...] = jnp.zeros_like(acc_ref)

    h = jnp.dot(xn_ref[...], w1_ref[...], preferred_element_type=jnp.float32)
    h = h + b1_ref[...].astype(jnp.float32)
    # exact GELU (erf form), matching nn.GELU() defaults; math in f32.
    h = 0.5 * h * (1.0 + jax.lax.erf(h * _INV_SQRT2))
    acc_ref[...] += jnp.dot(h.astype(w2_ref.dtype), w2_ref[...],
                            preferred_element_type=jnp.float32)

    @pl.when(j == pl.num_programs(1) - 1)
    def _flush():
        o_ref[...] = (x_ref[...].astype(jnp.float32) + acc_ref[...]
                      + b2_ref[...].astype(jnp.float32)).astype(o_ref.dtype)


def mlp_ln_residual(x, gamma, beta, w1, b1, w2, b2, *, tile_m=256, tile_h4=512):
    """x + c_proj(GELU(fc(LayerNorm(x)))).  x: (..., H) f32; w1/w2 bf16."""
    orig_shape = x.shape
    H = orig_shape[-1]
    H4 = w1.shape[1]

    x2 = x.reshape(-1, H)
    M = x2.shape[0]
    tm = _pick_row_tile(M, tile_m)
    Mp = _round_up(M, tm)
    x2 = _pad_rows(x2, Mp)
    th4, H4p = _pick_col_tile(H4, tile_h4)
    w1p = _pad_cols(w1, H4p)
    b1p = _pad_cols(b1.reshape(1, H4), H4p)
    w2p = w2 if H4p == H4 else jnp.pad(w2, ((0, H4p - H4), (0, 0)))
    b2p = b2.reshape(1, H)

    xb = jnp.dtype(x2.dtype).itemsize
    wb = jnp.dtype(w1p.dtype).itemsize
    block_bytes = (tm * H * xb + H * th4 * wb + th4 * 4
                   + th4 * H * wb + H * 4 + tm * H * xb)
    vmem = _vmem_limit(2 * block_bytes + tm * H * 4 + tm * H * 2 + tm * th4 * 4)

    cost = pl.CostEstimate(
        flops=int(4 * Mp * H * H4p + 12 * Mp * H),
        transcendentals=int(Mp * H4p),
        bytes_accessed=int(2 * Mp * H * xb + 2 * H * H4p * wb + H4p * 4 + H * 4),
    )

    out = pl.pallas_call(
        _mlp_kernel,
        out_shape=jax.ShapeDtypeStruct((Mp, H), x.dtype),
        grid_spec=pltpu.PrefetchScalarGridSpec(
            num_scalar_prefetch=0,
            grid=(Mp // tm, H4p // th4),               # 4H reduction axis last
            in_specs=[
                pl.BlockSpec((tm, H), lambda i, j: (i, 0)),     # token rows (LN + resid)
                pl.BlockSpec((1, H), lambda i, j: (0, 0)),      # ln_2 gamma
                pl.BlockSpec((1, H), lambda i, j: (0, 0)),      # ln_2 beta
                pl.BlockSpec((H, th4), lambda i, j: (0, j)),    # w1 column chunk
                pl.BlockSpec((1, th4), lambda i, j: (0, j)),    # b1 chunk
                pl.BlockSpec((th4, H), lambda i, j: (j, 0)),    # w2 row chunk
                pl.BlockSpec((1, H), lambda i, j: (0, 0)),      # b2 (resident)
            ],
            out_specs=pl.BlockSpec((tm, H), lambda i, j: (i, 0)),
            scratch_shapes=[pltpu.VMEM((tm, H), jnp.float32),   # f32 accumulator
                            pltpu.VMEM((tm, H), jnp.bfloat16)], # cached LN(x)
        ),
        compiler_params=pltpu.CompilerParams(
            dimension_semantics=("parallel", "arbitrary"),
            vmem_limit_bytes=vmem,
        ),
        cost_estimate=cost,
    )(x2, gamma.reshape(1, H), beta.reshape(1, H), w1p, b1p, w2p, b2p)
    return out[:M].reshape(orig_shape)


# ---------------------------------------------------------------------------
# Full VanillaTransformer forward
# ---------------------------------------------------------------------------
def vanilla_transformer_forward(inputs, params, num_heads):
    """inputs: int token ids (B, T) -> logits (B, T, vocab_size)."""
    B, T = inputs.shape
    # TODO(synk): embedding gather (wte/wpe lookup) stays in plain JAX (jnp.take).
    x = jnp.take(params["wte"], inputs, axis=0) + params["wpe"][:T][None, :, :]
    x = x.astype(jnp.float32)
    # TODO(synk): all Dropout layers run as identity (eval mode / p=0);
    # training-mode masks would need pltpu.prng_seed + prng_random_bits in-kernel.

    for blk in params["blocks"]:
        qkv = ln_linear(x, blk["ln1_g"], blk["ln1_b"],
                        blk["attn_w"], blk["attn_b"], out_dtype=jnp.bfloat16)
        y = causal_attention(qkv, num_heads)                     # (B, T, H) bf16
        x = linear_residual(y, blk["proj_w"], blk["proj_b"], x)  # + residual, f32
        x = mlp_ln_residual(x, blk["ln2_g"], blk["ln2_b"],
                            blk["fc_w"], blk["fc_b"],
                            blk["cproj_w"], blk["cproj_b"])      # + residual, f32

    logits = ln_linear(x, params["lnf_g"], params["lnf_b"],
                       params["head_w"], params["head_b"],
                       out_dtype=jnp.float32, tile_m=512)
    return logits


# ---------------------------------------------------------------------------
# Parameter init (mirrors the PyTorch _init_weights scheme; [in, out] layout).
# Weight matrices are stored in bf16 (MXU-native); biases/LN params in f32.
# ---------------------------------------------------------------------------
def init_params(key, cfg):
    H, V, L, nl = cfg["hidden_dim"], cfg["vocab_size"], cfg["max_length"], cfg["n_layer"]
    std = 0.02
    cproj_std = 0.02 / math.sqrt(2 * nl)
    keys = jax.random.split(key, 3 + nl)

    def nrm(k, shape, s, dtype=jnp.bfloat16):
        return (s * jax.random.normal(k, shape, jnp.float32)).astype(dtype)

    params = dict(
        wte=nrm(keys[0], (V, H), std, jnp.float32),
        wpe=nrm(keys[1], (L, H), std, jnp.float32),
        lnf_g=jnp.ones((H,), jnp.float32), lnf_b=jnp.zeros((H,), jnp.float32),
        head_w=nrm(keys[2], (H, V), std), head_b=jnp.zeros((V,), jnp.float32),
        blocks=[],
    )
    for layer in range(nl):
        bk = jax.random.split(keys[3 + layer], 4)
        params["blocks"].append(dict(
            ln1_g=jnp.ones((H,), jnp.float32), ln1_b=jnp.zeros((H,), jnp.float32),
            attn_w=nrm(bk[0], (H, 3 * H), std), attn_b=jnp.zeros((3 * H,), jnp.float32),
            proj_w=nrm(bk[1], (H, H), cproj_std), proj_b=jnp.zeros((H,), jnp.float32),
            ln2_g=jnp.ones((H,), jnp.float32), ln2_b=jnp.zeros((H,), jnp.float32),
            fc_w=nrm(bk[2], (H, 4 * H), std), fc_b=jnp.zeros((4 * H,), jnp.float32),
            cproj_w=nrm(bk[3], (4 * H, H), cproj_std), cproj_b=jnp.zeros((H,), jnp.float32),
        ))
    return params


# ---------------------------------------------------------------------------
# Pure-JAX reference with the same mixed-precision contract (bf16 matmul
# operands, f32 accumulation, f32 LN/softmax/GELU, f32 residual stream).
# ---------------------------------------------------------------------------
def reference_forward(inputs, params, num_heads):
    B, T = inputs.shape
    H = params["wte"].shape[1]
    dh = H // num_heads
    bf = jnp.bfloat16

    def ln(x, g, b):
        m = jnp.mean(x, axis=-1, keepdims=True)
        v = jnp.mean(jnp.square(x - m), axis=-1, keepdims=True)
        return (x - m) * jax.lax.rsqrt(v + 1e-5) * g + b

    def mm(a, w):
        return jnp.dot(a.astype(bf), w.astype(bf), preferred_element_type=jnp.float32)

    x = (params["wte"][inputs] + params["wpe"][:T][None, :, :]).astype(jnp.float32)
    for blk in params["blocks"]:
        xn = ln(x, blk["ln1_g"], blk["ln1_b"])
        qkv = (mm(xn, blk["attn_w"]) + blk["attn_b"]).astype(bf)
        q, k, v = jnp.split(qkv, 3, axis=-1)

        def heads(t):
            return t.reshape(B, T, num_heads, dh).transpose(0, 2, 1, 3)

        q, k, v = heads(q), heads(k), heads(v)
        s = jnp.einsum("bhtd,bhsd->bhts", q, k,
                       preferred_element_type=jnp.float32) * (1.0 / math.sqrt(dh))
        mask = jnp.tril(jnp.ones((T, T), bool))
        s = jnp.where(mask[None, None], s, -1e30)
        s = s - jnp.max(s, axis=-1, keepdims=True)
        p = jnp.exp(s)
        p = p / jnp.sum(p, axis=-1, keepdims=True)
        y = jnp.einsum("bhts,bhsd->bhtd", p.astype(bf), v,
                       preferred_element_type=jnp.float32)
        y = y.transpose(0, 2, 1, 3).reshape(B, T, H).astype(bf)
        x = x + mm(y, blk["proj_w"]) + blk["proj_b"]

        xn2 = ln(x, blk["ln2_g"], blk["ln2_b"])
        hdn = mm(xn2, blk["fc_w"]) + blk["fc_b"]
        hdn = 0.5 * hdn * (1.0 + jax.lax.erf(hdn * _INV_SQRT2))
        x = x + mm(hdn, blk["cproj_w"]) + blk["cproj_b"]

    xn = ln(x, params["lnf_g"], params["lnf_b"])
    return mm(xn, params["head_w"]) + params["head_b"]


if __name__ == "__main__":
    cfg = dict(hidden_dim=32, num_heads=4, max_length=8,
               vocab_size=64, n_layer=1, dropout=0.0)
    B, T = 2, cfg["max_length"]

    key = jax.random.PRNGKey(0)
    k_idx, k_par = jax.random.split(key)
    inputs = jax.random.randint(k_idx, (B, T), 0, cfg["vocab_size"], dtype=jnp.int32)
    params = init_params(k_par, cfg)

    fwd = jax.jit(vanilla_transformer_forward, static_argnums=2)
    logits = fwd(inputs, params, cfg["num_heads"])
    jax.block_until_ready(logits)

    ref = reference_forward(inputs, params, cfg["num_heads"])
    assert logits.shape == (B, T, cfg["vocab_size"]), logits.shape
    max_err = float(jnp.max(jnp.abs(logits - ref)))
    assert bool(jnp.all(jnp.isfinite(logits))), "non-finite logits"
    assert jnp.allclose(logits, ref, atol=2e-2, rtol=2e-2), f"mismatch, max_err={max_err}"

    print("KERNEL_OK")
</pallas_src>

<mosaic_0001>
module attributes {stable_mosaic.version = 11 : i64} {
  func.func @_linear_resid_kernel(%arg0: i32, %arg1: i32, %arg2: memref<16x32xbf16, #tpu.memory_space<vmem>>, %arg3: memref<32x32xbf16, #tpu.memory_space<vmem>>, %arg4: memref<1x32xf32, #tpu.memory_space<vmem>>, %arg5: memref<16x32xf32, #tpu.memory_space<vmem>>, %arg6: memref<16x32xf32, #tpu.memory_space<vmem>>) attributes {dimension_semantics = [#tpu.dimension_semantics<parallel>, #tpu.dimension_semantics<parallel>], iteration_bounds = array<i64: 1, 1>, scalar_prefetch = 0 : i64, scratch_operands = 0 : i64, tpu.core_type = #tpu.core_type<tc>, window_params = [{transform_indices = @transform_0, window_bounds = array<i64: 16, 32>}, {transform_indices = @transform_1, window_bounds = array<i64: 32, 32>}, {transform_indices = @transform_2, window_bounds = array<i64: 1, 32>}, {transform_indices = @transform_3, window_bounds = array<i64: 16, 32>}, {transform_indices = @transform_4, window_bounds = array<i64: 16, 32>}]} {
    %c0 = arith.constant 0 : index
    %c0_0 = arith.constant 0 : index
    %0 = vector.load %arg2[%c0, %c0_0] : memref<16x32xbf16, #tpu.memory_space<vmem>>, vector<16x32xbf16>
    %c0_1 = arith.constant 0 : index
    %c0_2 = arith.constant 0 : index
    %1 = vector.load %arg3[%c0_1, %c0_2] : memref<32x32xbf16, #tpu.memory_space<vmem>>, vector<32x32xbf16>
    %cst = arith.constant dense<0.000000e+00> : vector<16x32xf32>
    %2 = tpu.matmul %0, %1, %cst {dimension_numbers = #tpu.dot_dimension_numbers<[1], [0], [0], [1], [0, 0, 1, 1], [], []>} : vector<16x32xbf16>, vector<32x32xbf16>, vector<16x32xf32> -> vector<16x32xf32>
    %c0_3 = arith.constant 0 : index
    %c0_4 = arith.constant 0 : index
    %3 = vector.load %arg5[%c0_3, %c0_4] : memref<16x32xf32, #tpu.memory_space<vmem>>, vector<16x32xf32>
    %4 = arith.addf %3, %2 : vector<16x32xf32>
    %c0_5 = arith.constant 0 : index
    %c0_6 = arith.constant 0 : index
    %5 = vector.load %arg4[%c0_5, %c0_6] : memref<1x32xf32, #tpu.memory_space<vmem>>, vector<1x32xf32>
    %6 = vector.broadcast %5 : vector<1x32xf32> to vector<16x32xf32>
    %7 = arith.addf %4, %6 : vector<16x32xf32>
    %c0_7 = arith.constant 0 : index
    %c0_8 = arith.constant 0 : index
    %8 = vector.load %arg6[%c0_7, %c0_8] : memref<16x32xf32, #tpu.memory_space<vmem>>, vector<16x32xf32>
    tpu.vector_store %arg6[%c0_7, %c0_8], %7 {strides = array<i32>} : memref<16x32xf32, #tpu.memory_space<vmem>>, vector<16x32xf32>,
    return
  }
  func.func @transform_0(%arg0: i32, %arg1: i32) -> (i32, i32) {
    %c0_i32 = arith.constant 0 : i32
    %c0_i32_0 = arith.constant 0 : i32
    return %arg0, %c0_i32 : i32, i32
  }
  func.func @transform_1(%arg0: i32, %arg1: i32) -> (i32, i32) {
    %c0_i32 = arith.constant 0 : i32
    %c0_i32_0 = arith.constant 0 : i32
    return %c0_i32, %arg1 : i32, i32
  }
  func.func @transform_2(%arg0: i32, %arg1: i32) -> (i32, i32) {
    %c0_i32 = arith.constant 0 : i32
    %c0_i32_0 = arith.constant 0 : i32
    return %c0_i32, %arg1 : i32, i32
  }
  func.func @transform_3(%arg0: i32, %arg1: i32) -> (i32, i32) {
    %c0_i32 = arith.constant 0 : i32
    return %arg0, %arg1 : i32, i32
  }
  func.func @transform_4(%arg0: i32, %arg1: i32) -> (i32, i32) {
    %c0_i32 = arith.constant 0 : i32
    return %arg0, %arg1 : i32, i32
  }
}

module attributes {stable_mosaic.version = 11 : i64} {
  func.func @_attn_kernel(%arg0: i32, %arg1: i32, %arg2: memref<1x8x96xbf16, #tpu.memory_space<vmem>>, %arg3: memref<1x8x96xbf16, #tpu.memory_space<vmem>>, %arg4: memref<1x8x32xbf16, #tpu.memory_space<vmem>>) attributes {dimension_semantics = [#tpu.dimension_semantics<parallel>, #tpu.dimension_semantics<parallel>], iteration_bounds = array<i64: 2, 1>, scalar_prefetch = 0 : i64, scratch_operands = 0 : i64, tpu.core_type = #tpu.core_type<tc>, window_params = [{transform_indices = @transform_0, window_bounds = array<i64: 1, 8, 96>}, {transform_indices = @transform_1, window_bounds = array<i64: 1, 8, 96>}, {transform_indices = @transform_2, window_bounds = array<i64: 1, 8, 32>}]} {
    %c0 = arith.constant 0 : index
    %c0_0 = arith.constant 0 : index
    %c0_1 = arith.constant 0 : index
    %0 = vector.load %arg2[%c0, %c0_0, %c0_1] : memref<1x8x96xbf16, #tpu.memory_space<vmem>>, vector<1x8x96xbf16>
    %1 = vector.shape_cast %0 : vector<1x8x96xbf16> to vector<8x96xbf16>
    %c0_2 = arith.constant 0 : index
    %c0_3 = arith.constant 0 : index
    %c0_4 = arith.constant 0 : index
    %2 = vector.load %arg3[%c0_2, %c0_3, %c0_4] : memref<1x8x96xbf16, #tpu.memory_space<vmem>>, vector<1x8x96xbf16>
    %3 = vector.shape_cast %2 : vector<1x8x96xbf16> to vector<8x96xbf16>
    %4 = vector.extract_strided_slice %1 {offsets = [0, 0], sizes = [8, 32], strides = [1, 1]} : vector<8x96xbf16> to vector<8x32xbf16>
    %5 = vector.extract_strided_slice %3 {offsets = [0, 32], sizes = [8, 32], strides = [1, 1]} : vector<8x96xbf16> to vector<8x32xbf16>
    %6 = vector.extract_strided_slice %3 {offsets = [0, 64], sizes = [8, 32], strides = [1, 1]} : vector<8x96xbf16> to vector<8x32xbf16>
    %c8_i32 = arith.constant 8 : i32
    %7 = arith.muli %arg1, %c8_i32 : i32
    %8 = tpu.iota {dimensions = array<i32: 0>} : vector<8x8xi32>
    %9 = vector.broadcast %7 : i32 to vector<8x8xi32>
    %10 = arith.addi %9, %8 : vector<8x8xi32>
    %11 = tpu.iota {dimensions = array<i32: 1>} : vector<8x8xi32>
    %12 = arith.cmpi sle, %11, %10 : vector<8x8xi32>
    %13 = vector.extract_strided_slice %4 {offsets = [0, 0], sizes = [8, 8], strides = [1, 1]} : vector<8x32xbf16> to vector<8x8xbf16>
    %14 = vector.extract_strided_slice %5 {offsets = [0, 0], sizes = [8, 8], strides = [1, 1]} : vector<8x32xbf16> to vector<8x8xbf16>
    %cst = arith.constant dense<0.000000e+00> : vector<8x8xf32>
    %15 = tpu.matmul %13, %14, %cst {dimension_numbers = #tpu.dot_dimension_numbers<[1], [1], [0], [0], [0, 0, 1, 0], [], []>} : vector<8x8xbf16>, vector<8x8xbf16>, vector<8x8xf32> -> vector<8x8xf32>
    %cst_5 = arith.constant 0.353553385 : f32
    %16 = vector.broadcast %cst_5 : f32 to vector<8x8xf32>
    %17 = arith.mulf %15, %16 : vector<8x8xf32>
    %cst_6 = arith.constant -1.000000e+30 : f32
    %18 = vector.broadcast %cst_6 : f32 to vector<8x8xf32>
    %19 = arith.select %12, %17, %18 : vector<8x8xi1>, vector<8x8xf32>
    %cst_7 = arith.constant dense<0xFF800000> : vector<8xf32>
    %20 = vector.multi_reduction <maximumf>, %19, %cst_7 [1] : vector<8x8xf32> to vector<8xf32>
    %21 = vector.shape_cast %20 : vector<8xf32> to vector<8x1xf32>
    %22 = vector.broadcast %21 : vector<8x1xf32> to vector<8x8xf32>
    %23 = arith.subf %19, %22 : vector<8x8xf32>
    %24 = math.exp %23 : vector<8x8xf32>
    %cst_8 = arith.constant dense<0.000000e+00> : vector<8xf32>
    %25 = vector.multi_reduction <add>, %24, %cst_8 [1] : vector<8x8xf32> to vector<8xf32>
    %26 = vector.shape_cast %25 : vector<8xf32> to vector<8x1xf32>
    %27 = vector.broadcast %26 : vector<8x1xf32> to vector<8x8xf32>
    %28 = arith.divf %24, %27 : vector<8x8xf32>
    %29 = arith.truncf %28 : vector<8x8xf32> to vector<8x8xbf16>
    %30 = vector.extract_strided_slice %6 {offsets = [0, 0], sizes = [8, 8], strides = [1, 1]} : vector<8x32xbf16> to vector<8x8xbf16>
    %cst_9 = arith.constant dense<0.000000e+00> : vector<8x8xf32>
    %31 = tpu.matmul %29, %30, %cst_9 {dimension_numbers = #tpu.dot_dimension_numbers<[1], [0], [0], [1], [0, 0, 1, 1], [], []>} : vector<8x8xbf16>, vector<8x8xbf16>, vector<8x8xf32> -> vector<8x8xf32>
    %32 = vector.extract_strided_slice %4 {offsets = [0, 8], sizes = [8, 8], strides = [1, 1]} : vector<8x32xbf16> to vector<8x8xbf16>
    %33 = vector.extract_strided_slice %5 {offsets = [0, 8], sizes = [8, 8], strides = [1, 1]} : vector<8x32xbf16> to vector<8x8xbf16>
    %cst_10 = arith.constant dense<0.000000e+00> : vector<8x8xf32>
    %34 = tpu.matmul %32, %33, %cst_10 {dimension_numbers = #tpu.dot_dimension_numbers<[1], [1], [0], [0], [0, 0, 1, 0], [], []>} : vector<8x8xbf16>, vector<8x8xbf16>, vector<8x8xf32> -> vector<8x8xf32>
    %cst_11 = arith.constant 0.353553385 : f32
    %35 = vector.broadcast %cst_11 : f32 to vector<8x8xf32>
    %36 = arith.mulf %34, %35 : vector<8x8xf32>
    %cst_12 = arith.constant -1.000000e+30 : f32
    %37 = vector.broadcast %cst_12 : f32 to vector<8x8xf32>
    %38 = arith.select %12, %36, %37 : vector<8x8xi1>, vector<8x8xf32>
    %cst_13 = arith.constant dense<0xFF800000> : vector<8xf32>
    %39 = vector.multi_reduction <maximumf>, %38, %cst_13 [1] : vector<8x8xf32> to vector<8xf32>
    %40 = vector.shape_cast %39 : vector<8xf32> to vector<8x1xf32>
    %41 = vector.broadcast %40 : vector<8x1xf32> to vector<8x8xf32>
    %42 = arith.subf %38, %41 : vector<8x8xf32>
    %43 = math.exp %42 : vector<8x8xf32>
    %cst_14 = arith.constant dense<0.000000e+00> : vector<8xf32>
    %44 = vector.multi_reduction <add>, %43, %cst_14 [1] : vector<8x8xf32> to vector<8xf32>
    %45 = vector.shape_cast %44 : vector<8xf32> to vector<8x1xf32>
    %46 = vector.broadcast %45 : vector<8x1xf32> to vector<8x8xf32>
    %47 = arith.divf %43, %46 : vector<8x8xf32>
    %48 = arith.truncf %47 : vector<8x8xf32> to vector<8x8xbf16>
    %49 = vector.extract_strided_slice %6 {offsets = [0, 8], sizes = [8, 8], strides = [1, 1]} : vector<8x32xbf16> to vector<8x8xbf16>
    %cst_15 = arith.constant dense<0.000000e+00> : vector<8x8xf32>
    %50 = tpu.matmul %48, %49, %cst_15 {dimension_numbers = #tpu.dot_dimension_numbers<[1], [0], [0], [1], [0, 0, 1, 1], [], []>} : vector<8x8xbf16>, vector<8x8xbf16>, vector<8x8xf32> -> vector<8x8xf32>
    %51 = vector.extract_strided_slice %4 {offsets = [0, 16], sizes = [8, 8], strides = [1, 1]} : vector<8x32xbf16> to vector<8x8xbf16>
    %52 = vector.extract_strided_slice %5 {offsets = [0, 16], sizes = [8, 8], strides = [1, 1]} : vector<8x32xbf16> to vector<8x8xbf16>
    %cst_16 = arith.constant dense<0.000000e+00> : vector<8x8xf32>
    %53 = tpu.matmul %51, %52, %cst_16 {dimension_numbers = #tpu.dot_dimension_numbers<[1], [1], [0], [0], [0, 0, 1, 0], [], []>} : vector<8x8xbf16>, vector<8x8xbf16>, vector<8x8xf32> -> vector<8x8xf32>
    %cst_17 = arith.constant 0.353553385 : f32
    %54 = vector.broadcast %cst_17 : f32 to vector<8x8xf32>
    %55 = arith.mulf %53, %54 : vector<8x8xf32>
    %cst_18 = arith.constant -1.000000e+30 : f32
    %56 = vector.broadcast %cst_18 : f32 to vector<8x8xf32>
    %57 = arith.select %12, %55, %56 : vector<8x8xi1>, vector<8x8xf32>
    %cst_19 = arith.constant dense<0xFF800000> : vector<8xf32>
    %58 = vector.multi_reduction <maximumf>, %57, %cst_19 [1] : vector<8x8xf32> to vector<8xf32>
    %59 = vector.shape_cast %58 : vector<8xf32> to vector<8x1xf32>
    %60 = vector.broadcast %59 : vector<8x1xf32> to vector<8x8xf32>
    %61 = arith.subf %57, %60 : vector<8x8xf32>
    %62 = math.exp %61 : vector<8x8xf32>
    %cst_20 = arith.constant dense<0.000000e+00> : vector<8xf32>
    %63 = vector.multi_reduction <add>, %62, %cst_20 [1] : vector<8x8xf32> to vector<8xf32>
    %64 = vector.shape_cast %63 : vector<8xf32> to vector<8x1xf32>
    %65 = vector.broadcast %64 : vector<8x1xf32> to vector<8x8xf32>
    %66 = arith.divf %62, %65 : vector<8x8xf32>
    %67 = arith.truncf %66 : vector<8x8xf32> to vector<8x8xbf16>
    %68 = vector.extract_strided_slice %6 {offsets = [0, 16], sizes = [8, 8], strides = [1, 1]} : vector<8x32xbf16> to vector<8x8xbf16>
    %cst_21 = arith.constant dense<0.000000e+00> : vector<8x8xf32>
    %69 = tpu.matmul %67, %68, %cst_21 {dimension_numbers = #tpu.dot_dimension_numbers<[1], [0], [0], [1], [0, 0, 1, 1], [], []>} : vector<8x8xbf16>, vector<8x8xbf16>, vector<8x8xf32> -> vector<8x8xf32>
    %70 = vector.extract_strided_slice %4 {offsets = [0, 24], sizes = [8, 8], strides = [1, 1]} : vector<8x32xbf16> to vector<8x8xbf16>
    %71 = vector.extract_strided_slice %5 {offsets = [0, 24], sizes = [8, 8], strides = [1, 1]} : vector<8x32xbf16> to vector<8x8xbf16>
    %cst_22 = arith.constant dense<0.000000e+00> : vector<8x8xf32>
    %72 = tpu.matmul %70, %71, %cst_22 {dimension_numbers = #tpu.dot_dimension_numbers<[1], [1], [0], [0], [0, 0, 1, 0], [], []>} : vector<8x8xbf16>, vector<8x8xbf16>, vector<8x8xf32> -> vector<8x8xf32>
    %cst_23 = arith.constant 0.353553385 : f32
    %73 = vector.broadcast %cst_23 : f32 to vector<8x8xf32>
    %74 = arith.mulf %72, %73 : vector<8x8xf32>
    %cst_24 = arith.constant -1.000000e+30 : f32
    %75 = vector.broadcast %cst_24 : f32 to vector<8x8xf32>
    %76 = arith.select %12, %74, %75 : vector<8x8xi1>, vector<8x8xf32>
    %cst_25 = arith.constant dense<0xFF800000> : vector<8xf32>
    %77 = vector.multi_reduction <maximumf>, %76, %cst_25 [1] : vector<8x8xf32> to vector<8xf32>
    %78 = vector.shape_cast %77 : vector<8xf32> to vector<8x1xf32>
    %79 = vector.broadcast %78 : vector<8x1xf32> to vector<8x8xf32>
    %80 = arith.subf %76, %79 : vector<8x8xf32>
    %81 = math.exp %80 : vector<8x8xf32>
    %cst_26 = arith.constant dense<0.000000e+00> : vector<8xf32>
    %82 = vector.multi_reduction <add>, %81, %cst_26 [1] : vector<8x8xf32> to vector<8xf32>
    %83 = vector.shape_cast %82 : vector<8xf32> to vector<8x1xf32>
    %84 = vector.broadcast %83 : vector<8x1xf32> to vector<8x8xf32>
    %85 = arith.divf %81, %84 : vector<8x8xf32>
    %86 = arith.truncf %85 : vector<8x8xf32> to vector<8x8xbf16>
    %87 = vector.extract_strided_slice %6 {offsets = [0, 24], sizes = [8, 8], strides = [1, 1]} : vector<8x32xbf16> to vector<8x8xbf16>
    %cst_27 = arith.constant dense<0.000000e+00> : vector<8x8xf32>
    %88 = tpu.matmul %86, %87, %cst_27 {dimension_numbers = #tpu.dot_dimension_numbers<[1], [0], [0], [1], [0, 0, 1, 1], [], []>} : vector<8x8xbf16>, vector<8x8xbf16>, vector<8x8xf32> -> vector<8x8xf32>
    %89 = tpu.concatenate %31, %50, %69, %88 in 1 : vector<8x8xf32>, vector<8x8xf32>, vector<8x8xf32>, vector<8x8xf32> -> vector<8x32xf32>
    %90 = arith.truncf %89 : vector<8x32xf32> to vector<8x32xbf16>
    %c0_28 = arith.constant 0 : index
    %c0_29 = arith.constant 0 : index
    %c0_30 = arith.constant 0 : index
    %91 = vector.load %arg4[%c0_28, %c0_29, %c0_30] : memref<1x8x32xbf16, #tpu.memory_space<vmem>>, vector<1x8x32xbf16>
    %92 = vector.shape_cast %91 : vector<1x8x32xbf16> to vector<8x32xbf16>
    %93 = vector.shape_cast %90 : vector<8x32xbf16> to vector<1x8x32xbf16>
    tpu.vector_store %arg4[%c0_28, %c0_29, %c0_30], %93 {strides = array<i32>} : memref<1x8x32xbf16, #tpu.memory_space<vmem>>, vector<1x8x32xbf16>,
    return
  }
  func.func @transform_0(%arg0: i32, %arg1: i32) -> (i32, i32, i32) {
    %c0_i32 = arith.constant 0 : i32
    %c0_i32_0 = arith.constant 0 : i32
    return %arg0, %arg1, %c0_i32 : i32, i32, i32
  }
  func.func @transform_1(%arg0: i32, %arg1: i32) -> (i32, i32, i32) {
    %c0_i32 = arith.constant 0 : i32
    %c0_i32_0 = arith.constant 0 : i32
    %c0_i32_1 = arith.constant 0 : i32
    return %arg0, %c0_i32, %c0_i32_0 : i32, i32, i32
  }
  func.func @transform_2(%arg0: i32, %arg1: i32) -> (i32, i32, i32) {
    %c0_i32 = arith.constant 0 : i32
    %c0_i32_0 = arith.constant 0 : i32
    return %arg0, %arg1, %c0_i32 : i32, i32, i32
  }
}

module attributes {stable_mosaic.version = 11 : i64} {
  func.func @_ln_linear_kernel(%arg0: i32, %arg1: i32, %arg2: memref<16x32xf32, #tpu.memory_space<vmem>>, %arg3: memref<1x32xf32, #tpu.memory_space<vmem>>, %arg4: memref<1x32xf32, #tpu.memory_space<vmem>>, %arg5: memref<32x96xbf16, #tpu.memory_space<vmem>>, %arg6: memref<1x96xf32, #tpu.memory_space<vmem>>, %arg7: memref<16x96xbf16, #tpu.memory_space<vmem>>, %arg8: memref<16x32xbf16, #tpu.memory_space<vmem>>) attributes {dimension_semantics = [#tpu.dimension_semantics<parallel>, #tpu.dimension_semantics<arbitrary>], iteration_bounds = array<i64: 1, 1>, scalar_prefetch = 0 : i64, scratch_operands = 1 : i64, tpu.core_type = #tpu.core_type<tc>, window_params = [{transform_indices = @transform_0, window_bounds = array<i64: 16, 32>}, {pipeline_mode = #tpu.pipeline_mode<synchronous>, transform_indices = @transform_1, window_bounds = array<i64: 1, 32>}, {pipeline_mode = #tpu.pipeline_mode<synchronous>, transform_indices = @transform_2, window_bounds = array<i64: 1, 32>}, {transform_indices = @transform_3, window_bounds = array<i64: 32, 96>}, {transform_indices = @transform_4, window_bounds = array<i64: 1, 96>}, {transform_indices = @transform_5, window_bounds = array<i64: 16, 96>}]} {
    %c0_i32 = arith.constant 0 : i32
    %0 = arith.cmpi eq, %arg1, %c0_i32 : i32
    %1 = arith.extui %0 : i1 to i32
    %c0_i32_0 = arith.constant 0 : i32
    %2 = arith.cmpi ne, %1, %c0_i32_0 : i32
    scf.if %2 {
      %c0_8 = arith.constant 0 : index
      %c0_9 = arith.constant 0 : index
      %11 = vector.load %arg2[%c0_8, %c0_9] : memref<16x32xf32, #tpu.memory_space<vmem>>, vector<16x32xf32>
      %cst_10 = arith.constant dense<0.000000e+00> : vector<16xf32>
      %12 = vector.multi_reduction <add>, %11, %cst_10 [1] : vector<16x32xf32> to vector<16xf32>
      %13 = vector.shape_cast %12 : vector<16xf32> to vector<16x1xf32>
      %cst_11 = arith.constant 3.200000e+01 : f32
      %14 = vector.broadcast %cst_11 : f32 to vector<16x1xf32>
      %15 = arith.divf %13, %14 : vector<16x1xf32>
      %16 = vector.broadcast %15 : vector<16x1xf32> to vector<16x32xf32>
      %17 = arith.subf %11, %16 : vector<16x32xf32>
      %18 = arith.mulf %17, %17 : vector<16x32xf32>
      %cst_12 = arith.constant dense<0.000000e+00> : vector<16xf32>
      %19 = vector.multi_reduction <add>, %18, %cst_12 [1] : vector<16x32xf32> to vector<16xf32>
      %20 = vector.shape_cast %19 : vector<16xf32> to vector<16x1xf32>
      %cst_13 = arith.constant 3.200000e+01 : f32
      %21 = vector.broadcast %cst_13 : f32 to vector<16x1xf32>
      %22 = arith.divf %20, %21 : vector<16x1xf32>
      %23 = vector.broadcast %15 : vector<16x1xf32> to vector<16x32xf32>
      %24 = arith.subf %11, %23 : vector<16x32xf32>
      %cst_14 = arith.constant 9.99999974E-6 : f32
      %25 = vector.broadcast %cst_14 : f32 to vector<16x1xf32>
      %26 = arith.addf %22, %25 : vector<16x1xf32>
      %27 = math.rsqrt %26 : vector<16x1xf32>
      %28 = vector.broadcast %27 : vector<16x1xf32> to vector<16x32xf32>
      %29 = arith.mulf %24, %28 : vector<16x32xf32>
      %c0_15 = arith.constant 0 : index
      %c0_16 = arith.constant 0 : index
      %30 = vector.load %arg3[%c0_15, %c0_16] : memref<1x32xf32, #tpu.memory_space<vmem>>, vector<1x32xf32>
      %31 = vector.broadcast %30 : vector<1x32xf32> to vector<16x32xf32>
      %32 = arith.mulf %29, %31 : vector<16x32xf32>
      %c0_17 = arith.constant 0 : index
      %c0_18 = arith.constant 0 : index
      %33 = vector.load %arg4[%c0_17, %c0_18] : memref<1x32xf32, #tpu.memory_space<vmem>>, vector<1x32xf32>
      %34 = vector.broadcast %33 : vector<1x32xf32> to vector<16x32xf32>
      %35 = arith.addf %32, %34 : vector<16x32xf32>
      %36 = arith.truncf %35 : vector<16x32xf32> to vector<16x32xbf16>
      %c0_19 = arith.constant 0 : index
      %c0_20 = arith.constant 0 : index
      %37 = vector.load %arg8[%c0_19, %c0_20] : memref<16x32xbf16, #tpu.memory_space<vmem>>, vector<16x32xbf16>
      tpu.vector_store %arg8[%c0_19, %c0_20], %36 {strides = array<i32>} : memref<16x32xbf16, #tpu.memory_space<vmem>>, vector<16x32xbf16>,
    } else {
    }
    %c0 = arith.constant 0 : index
    %c0_1 = arith.constant 0 : index
    %3 = vector.load %arg8[%c0, %c0_1] : memref<16x32xbf16, #tpu.memory_space<vmem>>, vector<16x32xbf16>
    %c0_2 = arith.constant 0 : index
    %c0_3 = arith.constant 0 : index
    %4 = vector.load %arg5[%c0_2, %c0_3] : memref<32x96xbf16, #tpu.memory_space<vmem>>, vector<32x96xbf16>
    %cst = arith.constant dense<0.000000e+00> : vector<16x96xf32>
    %5 = tpu.matmul %3, %4, %cst {dimension_numbers = #tpu.dot_dimension_numbers<[1], [0], [0], [1], [0, 0, 1, 1], [], []>} : vector<16x32xbf16>, vector<32x96xbf16>, vector<16x96xf32> -> vector<16x96xf32>
    %c0_4 = arith.constant 0 : index
    %c0_5 = arith.constant 0 : index
    %6 = vector.load %arg6[%c0_4, %c0_5] : memref<1x96xf32, #tpu.memory_space<vmem>>, vector<1x96xf32>
    %7 = vector.broadcast %6 : vector<1x96xf32> to vector<16x96xf32>
    %8 = arith.addf %5, %7 : vector<16x96xf32>
    %9 = arith.truncf %8 : vector<16x96xf32> to vector<16x96xbf16>
    %c0_6 = arith.constant 0 : index
    %c0_7 = arith.constant 0 : index
    %10 = vector.load %arg7[%c0_6, %c0_7] : memref<16x96xbf16, #tpu.memory_space<vmem>>, vector<16x96xbf16>
    tpu.vector_store %arg7[%c0_6, %c0_7], %9 {strides = array<i32>} : memref<16x96xbf16, #tpu.memory_space<vmem>>, vector<16x96xbf16>,
    return
  }
  func.func @transform_0(%arg0: i32, %arg1: i32) -> (i32, i32) {
    %c0_i32 = arith.constant 0 : i32
    %c0_i32_0 = arith.constant 0 : i32
    return %arg0, %c0_i32 : i32, i32
  }
  func.func @transform_1(%arg0: i32, %arg1: i32) -> (i32, i32) {
    %c0_i32 = arith.constant 0 : i32
    %c0_i32_0 = arith.constant 0 : i32
    %c0_i32_1 = arith.constant 0 : i32
    return %c0_i32, %c0_i32_0 : i32, i32
  }
  func.func @transform_2(%arg0: i32, %arg1: i32) -> (i32, i32) {
    %c0_i32 = arith.constant 0 : i32
    %c0_i32_0 = arith.constant 0 : i32
    %c0_i32_1 = arith.constant 0 : i32
    return %c0_i32, %c0_i32_0 : i32, i32
  }
  func.func @transform_3(%arg0: i32, %arg1: i32) -> (i32, i32) {
    %c0_i32 = arith.constant 0 : i32
    %c0_i32_0 = arith.constant 0 : i32
    return %c0_i32, %arg1 : i32, i32
  }
  func.func @transform_4(%arg0: i32, %arg1: i32) -> (i32, i32) {
    %c0_i32 = arith.constant 0 : i32
    %c0_i32_0 = arith.constant 0 : i32
    return %c0_i32, %arg1 : i32, i32
  }
  func.func @transform_5(%arg0: i32, %arg1: i32) -> (i32, i32) {
    %c0_i32 = arith.constant 0 : i32
    return %arg0, %arg1 : i32, i32
  }
}

module attributes {stable_mosaic.version = 11 : i64} {
  func.func @_mlp_kernel(%arg0: i32, %arg1: i32, %arg2: memref<16x32xf32, #tpu.memory_space<vmem>>, %arg3: memref<1x32xf32, #tpu.memory_space<vmem>>, %arg4: memref<1x32xf32, #tpu.memory_space<vmem>>, %arg5: memref<32x128xbf16, #tpu.memory_space<vmem>>, %arg6: memref<1x128xf32, #tpu.memory_space<vmem>>, %arg7: memref<128x32xbf16, #tpu.memory_space<vmem>>, %arg8: memref<1x32xf32, #tpu.memory_space<vmem>>, %arg9: memref<16x32xf32, #tpu.memory_space<vmem>>, %arg10: memref<16x32xf32, #tpu.memory_space<vmem>>, %arg11: memref<16x32xbf16, #tpu.memory_space<vmem>>) attributes {dimension_semantics = [#tpu.dimension_semantics<parallel>, #tpu.dimension_semantics<arbitrary>], iteration_bounds = array<i64: 1, 1>, scalar_prefetch = 0 : i64, scratch_operands = 2 : i64, tpu.core_type = #tpu.core_type<tc>, window_params = [{transform_indices = @transform_0, window_bounds = array<i64: 16, 32>}, {pipeline_mode = #tpu.pipeline_mode<synchronous>, transform_indices = @transform_1, window_bounds = array<i64: 1, 32>}, {pipeline_mode = #tpu.pipeline_mode<synchronous>, transform_indices = @transform_2, window_bounds = array<i64: 1, 32>}, {transform_indices = @transform_3, window_bounds = array<i64: 32, 128>}, {transform_indices = @transform_4, window_bounds = array<i64: 1, 128>}, {transform_indices = @transform_5, window_bounds = array<i64: 128, 32>}, {pipeline_mode = #tpu.pipeline_mode<synchronous>, transform_indices = @transform_6, window_bounds = array<i64: 1, 32>}, {transform_indices = @transform_7, window_bounds = array<i64: 16, 32>}]} {
    %c0_i32 = arith.constant 0 : i32
    %0 = arith.cmpi eq, %arg1, %c0_i32 : i32
    %1 = arith.extui %0 : i1 to i32
    %c0_i32_0 = arith.constant 0 : i32
    %2 = arith.cmpi ne, %1, %c0_i32_0 : i32
    scf.if %2 {
      %c0_18 = arith.constant 0 : index
      %c0_19 = arith.constant 0 : index
      %26 = vector.load %arg2[%c0_18, %c0_19] : memref<16x32xf32, #tpu.memory_space<vmem>>, vector<16x32xf32>
      %cst_20 = arith.constant dense<0.000000e+00> : vector<16xf32>
      %27 = vector.multi_reduction <add>, %26, %cst_20 [1] : vector<16x32xf32> to vector<16xf32>
      %28 = vector.shape_cast %27 : vector<16xf32> to vector<16x1xf32>
      %cst_21 = arith.constant 3.200000e+01 : f32
      %29 = vector.broadcast %cst_21 : f32 to vector<16x1xf32>
      %30 = arith.divf %28, %29 : vector<16x1xf32>
      %31 = vector.broadcast %30 : vector<16x1xf32> to vector<16x32xf32>
      %32 = arith.subf %26, %31 : vector<16x32xf32>
      %33 = arith.mulf %32, %32 : vector<16x32xf32>
      %cst_22 = arith.constant dense<0.000000e+00> : vector<16xf32>
      %34 = vector.multi_reduction <add>, %33, %cst_22 [1] : vector<16x32xf32> to vector<16xf32>
      %35 = vector.shape_cast %34 : vector<16xf32> to vector<16x1xf32>
      %cst_23 = arith.constant 3.200000e+01 : f32
      %36 = vector.broadcast %cst_23 : f32 to vector<16x1xf32>
      %37 = arith.divf %35, %36 : vector<16x1xf32>
      %38 = vector.broadcast %30 : vector<16x1xf32> to vector<16x32xf32>
      %39 = arith.subf %26, %38 : vector<16x32xf32>
      %cst_24 = arith.constant 9.99999974E-6 : f32
      %40 = vector.broadcast %cst_24 : f32 to vector<16x1xf32>
      %41 = arith.addf %37, %40 : vector<16x1xf32>
      %42 = math.rsqrt %41 : vector<16x1xf32>
      %43 = vector.broadcast %42 : vector<16x1xf32> to vector<16x32xf32>
      %44 = arith.mulf %39, %43 : vector<16x32xf32>
      %c0_25 = arith.constant 0 : index
      %c0_26 = arith.constant 0 : index
      %45 = vector.load %arg3[%c0_25, %c0_26] : memref<1x32xf32, #tpu.memory_space<vmem>>, vector<1x32xf32>
      %46 = vector.broadcast %45 : vector<1x32xf32> to vector<16x32xf32>
      %47 = arith.mulf %44, %46 : vector<16x32xf32>
      %c0_27 = arith.constant 0 : index
      %c0_28 = arith.constant 0 : index
      %48 = vector.load %arg4[%c0_27, %c0_28] : memref<1x32xf32, #tpu.memory_space<vmem>>, vector<1x32xf32>
      %49 = vector.broadcast %48 : vector<1x32xf32> to vector<16x32xf32>
      %50 = arith.addf %47, %49 : vector<16x32xf32>
      %51 = arith.truncf %50 : vector<16x32xf32> to vector<16x32xbf16>
      %c0_29 = arith.constant 0 : index
      %c0_30 = arith.constant 0 : index
      %52 = vector.load %arg11[%c0_29, %c0_30] : memref<16x32xbf16, #tpu.memory_space<vmem>>, vector<16x32xbf16>
      tpu.vector_store %arg11[%c0_29, %c0_30], %51 {strides = array<i32>} : memref<16x32xbf16, #tpu.memory_space<vmem>>, vector<16x32xbf16>,
      %cst_31 = arith.constant 0.000000e+00 : f32
      %53 = vector.broadcast %cst_31 : f32 to vector<16x32xf32>
      %c0_32 = arith.constant 0 : index
      %c0_33 = arith.constant 0 : index
      %54 = vector.load %arg10[%c0_32, %c0_33] : memref<16x32xf32, #tpu.memory_space<vmem>>, vector<16x32xf32>
      tpu.vector_store %arg10[%c0_32, %c0_33], %53 {strides = array<i32>} : memref<16x32xf32, #tpu.memory_space<vmem>>, vector<16x32xf32>,
    } else {
    }
    %c0 = arith.constant 0 : index
    %c0_1 = arith.constant 0 : index
    %3 = vector.load %arg11[%c0, %c0_1] : memref<16x32xbf16, #tpu.memory_space<vmem>>, vector<16x32xbf16>
    %c0_2 = arith.constant 0 : index
    %c0_3 = arith.constant 0 : index
    %4 = vector.load %arg5[%c0_2, %c0_3] : memref<32x128xbf16, #tpu.memory_space<vmem>>, vector<32x128xbf16>
    %cst = arith.constant dense<0.000000e+00> : vector<16x128xf32>
    %5 = tpu.matmul %3, %4, %cst {dimension_numbers = #tpu.dot_dimension_numbers<[1], [0], [0], [1], [0, 0, 1, 1], [], []>} : vector<16x32xbf16>, vector<32x128xbf16>, vector<16x128xf32> -> vector<16x128xf32>
    %c0_4 = arith.constant 0 : index
    %c0_5 = arith.constant 0 : index
    %6 = vector.load %arg6[%c0_4, %c0_5] : memref<1x128xf32, #tpu.memory_space<vmem>>, vector<1x128xf32>
    %7 = vector.broadcast %6 : vector<1x128xf32> to vector<16x128xf32>
    %8 = arith.addf %5, %7 : vector<16x128xf32>
    %cst_6 = arith.constant 5.000000e-01 : f32
    %9 = vector.broadcast %cst_6 : f32 to vector<16x128xf32>
    %10 = arith.mulf %9, %8 : vector<16x128xf32>
    %cst_7 = arith.constant 0.707106769 : f32
    %11 = vector.broadcast %cst_7 : f32 to vector<16x128xf32>
    %12 = arith.mulf %8, %11 : vector<16x128xf32>
    %13 = math.erf %12 : vector<16x128xf32>
    %cst_8 = arith.constant 1.000000e+00 : f32
    %14 = vector.broadcast %cst_8 : f32 to vector<16x128xf32>
    %15 = arith.addf %14, %13 : vector<16x128xf32>
    %16 = arith.mulf %10, %15 : vector<16x128xf32>
    %c0_9 = arith.constant 0 : index
    %c0_10 = arith.constant 0 : index
    %17 = vector.load %arg10[%c0_9, %c0_10] : memref<16x32xf32, #tpu.memory_space<vmem>>, vector<16x32xf32>
    %18 = arith.truncf %16 : vector<16x128xf32> to vector<16x128xbf16>
    %c0_11 = arith.constant 0 : index
    %c0_12 = arith.constant 0 : index
    %19 = vector.load %arg7[%c0_11, %c0_12] : memref<128x32xbf16, #tpu.memory_space<vmem>>, vector<128x32xbf16>
    %cst_13 = arith.constant dense<0.000000e+00> : vector<16x32xf32>
    %20 = tpu.matmul %18, %19, %cst_13 {dimension_numbers = #tpu.dot_dimension_numbers<[1], [0], [0], [1], [0, 0, 1, 1], [], []>} : vector<16x128xbf16>, vector<128x32xbf16>, vector<16x32xf32> -> vector<16x32xf32>
    %21 = arith.addf %17, %20 : vector<16x32xf32>
    %c0_14 = arith.constant 0 : index
    %c0_15 = arith.constant 0 : index
    %22 = vector.load %arg10[%c0_14, %c0_15] : memref<16x32xf32, #tpu.memory_space<vmem>>, vector<16x32xf32>
    tpu.vector_store %arg10[%c0_14, %c0_15], %21 {strides = array<i32>} : memref<16x32xf32, #tpu.memory_space<vmem>>, vector<16x32xf32>,
    %c0_i32_16 = arith.constant 0 : i32
    %23 = arith.cmpi eq, %arg1, %c0_i32_16 : i32
    %24 = arith.extui %23 : i1 to i32
    %c0_i32_17 = arith.constant 0 : i32
    %25 = arith.cmpi ne, %24, %c0_i32_17 : i32
    scf.if %25 {
      %c0_18 = arith.constant 0 : index
      %c0_19 = arith.constant 0 : index
      %26 = vector.load %arg2[%c0_18, %c0_19] : memref<16x32xf32, #tpu.memory_space<vmem>>, vector<16x32xf32>
      %c0_20 = arith.constant 0 : index
      %c0_21 = arith.constant 0 : index
      %27 = vector.load %arg10[%c0_20, %c0_21] : memref<16x32xf32, #tpu.memory_space<vmem>>, vector<16x32xf32>
      %28 = arith.addf %26, %27 : vector<16x32xf32>
      %c0_22 = arith.constant 0 : index
      %c0_23 = arith.constant 0 : index
      %29 = vector.load %arg8[%c0_22, %c0_23] : memref<1x32xf32, #tpu.memory_space<vmem>>, vector<1x32xf32>
      %30 = vector.broadcast %29 : vector<1x32xf32> to vector<16x32xf32>
      %31 = arith.addf %28, %30 : vector<16x32xf32>
      %c0_24 = arith.constant 0 : index
      %c0_25 = arith.constant 0 : index
      %32 = vector.load %arg9[%c0_24, %c0_25] : memref<16x32xf32, #tpu.memory_space<vmem>>, vector<16x32xf32>
      tpu.vector_store %arg9[%c0_24, %c0_25], %31 {strides = array<i32>} : memref<16x32xf32, #tpu.memory_space<vmem>>, vector<16x32xf32>,
    } else {
    }
    return
  }
  func.func @transform_0(%arg0: i32, %arg1: i32) -> (i32, i32) {
    %c0_i32 = arith.constant 0 : i32
    %c0_i32_0 = arith.constant 0 : i32
    return %arg0, %c0_i32 : i32, i32
  }
  func.func @transform_1(%arg0: i32, %arg1: i32) -> (i32, i32) {
    %c0_i32 = arith.constant 0 : i32
    %c0_i32_0 = arith.constant 0 : i32
    %c0_i32_1 = arith.constant 0 : i32
    return %c0_i32, %c0_i32_0 : i32, i32
  }
  func.func @transform_2(%arg0: i32, %arg1: i32) -> (i32, i32) {
    %c0_i32 = arith.constant 0 : i32
    %c0_i32_0 = arith.constant 0 : i32
    %c0_i32_1 = arith.constant 0 : i32
    return %c0_i32, %c0_i32_0 : i32, i32
  }
  func.func @transform_3(%arg0: i32, %arg1: i32) -> (i32, i32) {
    %c0_i32 = arith.constant 0 : i32
    %c0_i32_0 = arith.constant 0 : i32
    return %c0_i32, %arg1 : i32, i32
  }
  func.func @transform_4(%arg0: i32, %arg1: i32) -> (i32, i32) {
    %c0_i32 = arith.constant 0 : i32
    %c0_i32_0 = arith.constant 0 : i32
    return %c0_i32, %arg1 : i32, i32
  }
  func.func @transform_5(%arg0: i32, %arg1: i32) -> (i32, i32) {
    %c0_i32 = arith.constant 0 : i32
    %c0_i32_0 = arith.constant 0 : i32
    return %arg1, %c0_i32 : i32, i32
  }
  func.func @transform_6(%arg0: i32, %arg1: i32) -> (i32, i32) {
    %c0_i32 = arith.constant 0 : i32
    %c0_i32_0 = arith.constant 0 : i32
    %c0_i32_1 = arith.constant 0 : i32
    return %c0_i32, %c0_i32_0 : i32, i32
  }
  func.func @transform_7(%arg0: i32, %arg1: i32) -> (i32, i32) {
    %c0_i32 = arith.constant 0 : i32
    %c0_i32_0 = arith.constant 0 : i32
    return %arg0, %c0_i32 : i32, i32
  }
}

module attributes {stable_mosaic.version = 11 : i64} {
  func.func @_ln_linear_kernel(%arg0: i32, %arg1: i32, %arg2: memref<16x32xf32, #tpu.memory_space<vmem>>, %arg3: memref<1x32xf32, #tpu.memory_space<vmem>>, %arg4: memref<1x32xf32, #tpu.memory_space<vmem>>, %arg5: memref<32x64xbf16, #tpu.memory_space<vmem>>, %arg6: memref<1x64xf32, #tpu.memory_space<vmem>>, %arg7: memref<16x64xf32, #tpu.memory_space<vmem>>, %arg8: memref<16x32xbf16, #tpu.memory_space<vmem>>) attributes {dimension_semantics = [#tpu.dimension_semantics<parallel>, #tpu.dimension_semantics<arbitrary>], iteration_bounds = array<i64: 1, 1>, scalar_prefetch = 0 : i64, scratch_operands = 1 : i64, tpu.core_type = #tpu.core_type<tc>, window_params = [{transform_indices = @transform_0, window_bounds = array<i64: 16, 32>}, {pipeline_mode = #tpu.pipeline_mode<synchronous>, transform_indices = @transform_1, window_bounds = array<i64: 1, 32>}, {pipeline_mode = #tpu.pipeline_mode<synchronous>, transform_indices = @transform_2, window_bounds = array<i64: 1, 32>}, {transform_indices = @transform_3, window_bounds = array<i64: 32, 64>}, {transform_indices = @transform_4, window_bounds = array<i64: 1, 64>}, {transform_indices = @transform_5, window_bounds = array<i64: 16, 64>}]} {
    %c0_i32 = arith.constant 0 : i32
    %0 = arith.cmpi eq, %arg1, %c0_i32 : i32
    %1 = arith.extui %0 : i1 to i32
    %c0_i32_0 = arith.constant 0 : i32
    %2 = arith.cmpi ne, %1, %c0_i32_0 : i32
    scf.if %2 {
      %c0_8 = arith.constant 0 : index
      %c0_9 = arith.constant 0 : index
      %10 = vector.load %arg2[%c0_8, %c0_9] : memref<16x32xf32, #tpu.memory_space<vmem>>, vector<16x32xf32>
      %cst_10 = arith.constant dense<0.000000e+00> : vector<16xf32>
      %11 = vector.multi_reduction <add>, %10, %cst_10 [1] : vector<16x32xf32> to vector<16xf32>
      %12 = vector.shape_cast %11 : vector<16xf32> to vector<16x1xf32>
      %cst_11 = arith.constant 3.200000e+01 : f32
      %13 = vector.broadcast %cst_11 : f32 to vector<16x1xf32>
      %14 = arith.divf %12, %13 : vector<16x1xf32>
      %15 = vector.broadcast %14 : vector<16x1xf32> to vector<16x32xf32>
      %16 = arith.subf %10, %15 : vector<16x32xf32>
      %17 = arith.mulf %16, %16 : vector<16x32xf32>
      %cst_12 = arith.constant dense<0.000000e+00> : vector<16xf32>
      %18 = vector.multi_reduction <add>, %17, %cst_12 [1] : vector<16x32xf32> to vector<16xf32>
      %19 = vector.shape_cast %18 : vector<16xf32> to vector<16x1xf32>
      %cst_13 = arith.constant 3.200000e+01 : f32
      %20 = vector.broadcast %cst_13 : f32 to vector<16x1xf32>
      %21 = arith.divf %19, %20 : vector<16x1xf32>
      %22 = vector.broadcast %14 : vector<16x1xf32> to vector<16x32xf32>
      %23 = arith.subf %10, %22 : vector<16x32xf32>
      %cst_14 = arith.constant 9.99999974E-6 : f32
      %24 = vector.broadcast %cst_14 : f32 to vector<16x1xf32>
      %25 = arith.addf %21, %24 : vector<16x1xf32>
      %26 = math.rsqrt %25 : vector<16x1xf32>
      %27 = vector.broadcast %26 : vector<16x1xf32> to vector<16x32xf32>
      %28 = arith.mulf %23, %27 : vector<16x32xf32>
      %c0_15 = arith.constant 0 : index
      %c0_16 = arith.constant 0 : index
      %29 = vector.load %arg3[%c0_15, %c0_16] : memref<1x32xf32, #tpu.memory_space<vmem>>, vector<1x32xf32>
      %30 = vector.broadcast %29 : vector<1x32xf32> to vector<16x32xf32>
      %31 = arith.mulf %28, %30 : vector<16x32xf32>
      %c0_17 = arith.constant 0 : index
      %c0_18 = arith.constant 0 : index
      %32 = vector.load %arg4[%c0_17, %c0_18] : memref<1x32xf32, #tpu.memory_space<vmem>>, vector<1x32xf32>
      %33 = vector.broadcast %32 : vector<1x32xf32> to vector<16x32xf32>
      %34 = arith.addf %31, %33 : vector<16x32xf32>
      %35 = arith.truncf %34 : vector<16x32xf32> to vector<16x32xbf16>
      %c0_19 = arith.constant 0 : index
      %c0_20 = arith.constant 0 : index
      %36 = vector.load %arg8[%c0_19, %c0_20] : memref<16x32xbf16, #tpu.memory_space<vmem>>, vector<16x32xbf16>
      tpu.vector_store %arg8[%c0_19, %c0_20], %35 {strides = array<i32>} : memref<16x32xbf16, #tpu.memory_space<vmem>>, vector<16x32xbf16>,
    } else {
    }
    %c0 = arith.constant 0 : index
    %c0_1 = arith.constant 0 : index
    %3 = vector.load %arg8[%c0, %c0_1] : memref<16x32xbf16, #tpu.memory_space<vmem>>, vector<16x32xbf16>
    %c0_2 = arith.constant 0 : index
    %c0_3 = arith.constant 0 : index
    %4 = vector.load %arg5[%c0_2, %c0_3] : memref<32x64xbf16, #tpu.memory_space<vmem>>, vector<32x64xbf16>
    %cst = arith.constant dense<0.000000e+00> : vector<16x64xf32>
    %5 = tpu.matmul %3, %4, %cst {dimension_numbers = #tpu.dot_dimension_numbers<[1], [0], [0], [1], [0, 0, 1, 1], [], []>} : vector<16x32xbf16>, vector<32x64xbf16>, vector<16x64xf32> -> vector<16x64xf32>
    %c0_4 = arith.constant 0 : index
    %c0_5 = arith.constant 0 : index
    %6 = vector.load %arg6[%c0_4, %c0_5] : memref<1x64xf32, #tpu.memory_space<vmem>>, vector<1x64xf32>
    %7 = vector.broadcast %6 : vector<1x64xf32> to vector<16x64xf32>
    %8 = arith.addf %5, %7 : vector<16x64xf32>
    %c0_6 = arith.constant 0 : index
    %c0_7 = arith.constant 0 : index
    %9 = vector.load %arg7[%c0_6, %c0_7] : memref<16x64xf32, #tpu.memory_space<vmem>>, vector<16x64xf32>
    tpu.vector_store %arg7[%c0_6, %c0_7], %8 {strides = array<i32>} : memref<16x64xf32, #tpu.memory_space<vmem>>, vector<16x64xf32>,
    return
  }
  func.func @transform_0(%arg0: i32, %arg1: i32) -> (i32, i32) {
    %c0_i32 = arith.constant 0 : i32
    %c0_i32_0 = arith.constant 0 : i32
    return %arg0, %c0_i32 : i32, i32
  }
  func.func @transform_1(%arg0: i32, %arg1: i32) -> (i32, i32) {
    %c0_i32 = arith.constant 0 : i32
    %c0_i32_0 = arith.constant 0 : i32
    %c0_i32_1 = arith.constant 0 : i32
    return %c0_i32, %c0_i32_0 : i32, i32
  }
  func.func @transform_2(%arg0: i32, %arg1: i32) -> (i32, i32) {
    %c0_i32 = arith.constant 0 : i32
    %c0_i32_0 = arith.constant 0 : i32
    %c0_i32_1 = arith.constant 0 : i32
    return %c0_i32, %c0_i32_0 : i32, i32
  }
  func.func @transform_3(%arg0: i32, %arg1: i32) -> (i32, i32) {
    %c0_i32 = arith.constant 0 : i32
    %c0_i32_0 = arith.constant 0 : i32
    return %c0_i32, %arg1 : i32, i32
  }
  func.func @transform_4(%arg0: i32, %arg1: i32) -> (i32, i32) {
    %c0_i32 = arith.constant 0 : i32
    %c0_i32_0 = arith.constant 0 : i32
    return %c0_i32, %arg1 : i32, i32
  }
  func.func @transform_5(%arg0: i32, %arg1: i32) -> (i32, i32) {
    %c0_i32 = arith.constant 0 : i32
    return %arg0, %arg1 : i32, i32
  }
}

</mosaic_0001>

<llo_original>
// kernel: vanilla_transformer_forward.7
$region0: #{vanilla_transformer_forward.7}
  #allocation0 [shape = 'u32[]', space=smem, size = 0x4, offset = 0x4, fixed_abs, tag = 'smem constant byte address 0x4 - core index']
  #allocation1 [shape = 'u32[144,128]{1,0:T(1,128)}', space=vmem, size = 0x12000, scoped, tag = 'internal scratch']
  %s0 = inlined_call_operand.vmem [shape: bf16[16,32], index: 0, kind: input, shape index: {}]
  %s1 = inlined_call_operand.vmem [shape: bf16[32,32], index: 1, kind: input, shape index: {}]
  %s2 = inlined_call_operand.vmem [shape: f32[1,32], index: 2, kind: input, shape index: {}]
  %s3 = inlined_call_operand.vmem [shape: f32[16,32], index: 3, kind: input, shape index: {}]
  %s4 = inlined_call_operand.vmem [shape: f32[16,32], index: 4, kind: output, shape index: {}]
  %s5 = sld [smem:[#allocation0]]
  $region26: #{vanilla_transformer_forward.7} parent=0
    _
  %s7 = ssub.s32 1, %s5
  %s8 = scalar_select 0, %s7, %s5
  // Predicated region
  $region2: #{vanilla_transformer_forward.7} parent=0 // pred_check
    _
  $region3: #{vanilla_transformer_forward.7} parent=0 // pred_check_branch
    %10 = sbr.rel (0) target = $region5
  $region4: #{vanilla_transformer_forward.7} parent=0 // pred_region
    _
  $region5: #{vanilla_transformer_forward.7} parent=0 // pred_fallthru
    _
  // Predicated region
  $region6: #{vanilla_transformer_forward.7} parent=0 // pred_check
    _
  $region7: #{vanilla_transformer_forward.7} parent=0 // pred_check_branch
    %12 = sbr.rel (0) target = $region9
  $region8: #{vanilla_transformer_forward.7} parent=0 // pred_region
    _
  $region9: #{vanilla_transformer_forward.7} parent=0 // pred_fallthru
    _
  // Predicated region
  $region10: #{vanilla_transformer_forward.7} parent=0 // pred_check
    _
  $region11: #{vanilla_transformer_forward.7} parent=0 // pred_check_branch
    %14 = sbr.rel (0) target = $region13
  $region12: #{vanilla_transformer_forward.7} parent=0 // pred_region
    _
  $region13: #{vanilla_transformer_forward.7} parent=0 // pred_fallthru
    _
  // Predicated region
  $region14: #{vanilla_transformer_forward.7} parent=0 // pred_check
    _
  $region15: #{vanilla_transformer_forward.7} parent=0 // pred_check_branch
    %16 = sbr.rel (0) target = $region17
  $region16: #{vanilla_transformer_forward.7} parent=0 // pred_region
    _
  $region17: #{vanilla_transformer_forward.7} parent=0 // pred_fallthru
    _
  %v18 = vld [vmem:[%s0] sm:$0xf]
  %v19 = vld [vmem:[%s0 + $0x4] sm:$0xf]
  %v20 = vld [vmem:[%s1] sm:$0xf]
  %v21 = vld [vmem:[%s1 + $0x4] sm:$0xf]
  %v22 = vld [vmem:[%s1 + $0x8] sm:$0xf]
  %v23 = vld [vmem:[%s1 + $0xc] sm:$0xf]
  %v26 = vunpack.c.l.b16 %v18
  %v27 = vunpack.c.l.b16 %v19
  %v28 = vpack.c.b16 %v27, %v26
  %v33 = vunpack.c.l.b16 %v20
  %v34 = vunpack.c.l.b16 %v21
  %v35 = vunpack.c.l.b16 %v22
  %v36 = vunpack.c.l.b16 %v23
  %v37 = vpack.c.b16 %v34, %v33
  %v38 = vpack.c.b16 %v36, %v35
  %vm41 = vcmask 261120
  %v43 = vsel %vm41, %v28, 0
  %45 = vmatprep.subr.bf16.mxu0 0
  %46 = vmatpush1.bf16.msra.mxu0 %v37
  %47 = vmatprep.subr.bf16.mxu0 0
  %48 = vmatpush1.bf16.msra.mxu0 %v38
  %49 = vmatprep.subr.bf16.mxu0 0
  %50 = vmatpush1.bf16.msra.mxu0 0
  %51 = vmatprep.subr.bf16.mxu0 0
  %52 = vmatpush1.bf16.msra.mxu0 0
  %53 = vmatprep.subr.bf16.mxu0 0
  %54 = vmatpush1.bf16.msra.mxu0 0
  %55 = vmatprep.subr.bf16.mxu0 0
  %56 = vmatpush1.bf16.msra.mxu0 0
  %57 = vmatprep.subr.bf16.mxu0 0
  %58 = vmatpush1.bf16.msra.mxu0 0
  %59 = vmatprep.subr.bf16.mxu0 0
  %60 = vmatpush1.bf16.msra.mxu0 0
  %61 = vmatprep.subr.bf16.mxu0 0
  %62 = vmatpush1.bf16.msra.mxu0 0
  %63 = vmatprep.subr.bf16.mxu0 0
  %64 = vmatpush1.bf16.msra.mxu0 0
  %65 = vmatprep.subr.bf16.mxu0 0
  %66 = vmatpush1.bf16.msra.mxu0 0
  %67 = vmatprep.subr.bf16.mxu0 0
  %68 = vmatpush1.bf16.msra.mxu0 0
  %69 = vmatprep.subr.bf16.mxu0 0
  %70 = vmatpush1.bf16.msra.mxu0 0
  %71 = vmatprep.subr.bf16.mxu0 0
  %72 = vmatpush1.bf16.msra.mxu0 0
  %73 = vmatprep.subr.bf16.mxu0 0
  %74 = vmatpush1.bf16.msra.mxu0 0
  %75 = vmatprep.subr.bf16.mxu0 0
  %76 = vmatpush1.bf16.msra.mxu0 0
  %77 = vmatprep.mubr.bf16.mxu0 0
  %78 = vmatmul.mubr.bf16.gmra.mrb[0].mxu0 %v43
  %v79 = vpop.f32.mrb[0].mxu0
  %v80 = vadd.f32 0.0, %v79
  %v81 = vpop.f32.mrb[0].mxu0
  %v82 = vpop.f32.mrb[0].mxu0
  %v83 = vadd.f32 0.0, %v82
  %v84 = vpop.f32.mrb[0].mxu0
  %85 = vdwg.mxu0
  %v86 = vld [vmem:[%s3] sm:$0xff]
  %v87 = vld [vmem:[%s3 + $0x8] sm:$0xff]
  %v88 = vadd.f32 %v86, %v80
  %v89 = vadd.f32 %v87, %v83
  %v90 = vld [vmem:[%s2] sm:$0x1]
  %v92 = vlaneseq
  %v93 = vshrl.u32 %v92, 7
  %v94 = vsub.s32 0, %v93
  %v95 = vrot.slane %v90, %v94
  %v97 = vadd.f32 %v88, %v95
  %v98 = vadd.f32 %v89, %v95
  %99 = vst.msk [vmem:[%s4] sm:$0xff] %vm41, %v97
  %100 = vst.msk [vmem:[%s4 + $0x8] sm:$0xff] %vm41, %v98
  // Predicated region
  $region18: #{vanilla_transformer_forward.7} parent=0 // pred_check
    _
  $region19: #{vanilla_transformer_forward.7} parent=0 // pred_check_branch
    %102 = sbr.rel (0) target = $region21
  $region20: #{vanilla_transformer_forward.7} parent=0 // pred_region
    _
  $region21: #{vanilla_transformer_forward.7} parent=0 // pred_fallthru
    _
  // Predicated region
  $region22: #{vanilla_transformer_forward.7} parent=0 // pred_check
    _
  $region23: #{vanilla_transformer_forward.7} parent=0 // pred_check_branch
    %104 = sbr.rel (0) target = $region25
  $region24: #{vanilla_transformer_forward.7} parent=0 // pred_region
    _
  $region25: #{vanilla_transformer_forward.7} parent=0 // pred_fallthru
    _

// kernel: vanilla_transformer_forward.5
$region0: #{vanilla_transformer_forward.5}
  #allocation0 [shape = 'u32[]', space=smem, size = 0x4, offset = 0x4, fixed_abs, tag = 'smem constant byte address 0x4 - core index']
  #allocation1 [shape = 'u32[144,128]{1,0:T(1,128)}', space=vmem, size = 0x12000, scoped, tag = 'internal scratch']
  #allocation2 [shape = 'bf16[16,32]{1,0:T(16,128)(2,1)}', space=vmem, size = 0x1000, scoped, tag = 'scratch operand']
  %s0 = inlined_call_operand.vmem [shape: f32[16,32], index: 0, kind: input, shape index: {}]
  %s1 = inlined_call_operand.vmem [shape: f32[1,32], index: 1, kind: input, shape index: {}]
  %s2 = inlined_call_operand.vmem [shape: f32[1,32], index: 2, kind: input, shape index: {}]
  %s3 = inlined_call_operand.vmem [shape: bf16[32,96], index: 3, kind: input, shape index: {}]
  %s4 = inlined_call_operand.vmem [shape: f32[1,96], index: 4, kind: input, shape index: {}]
  %s5 = inlined_call_operand.vmem [shape: bf16[16,96], index: 5, kind: output, shape index: {}]
  %s6 = sld [smem:[#allocation0]]
  $region34: #{vanilla_transformer_forward.5} parent=0
    _
  %s8 = ssub.s32 1, %s6
  %s9 = scalar_select 0, %s8, %s6
  // Predicated region
  $region2: #{vanilla_transformer_forward.5} parent=0 // pred_check
    _
  $region3: #{vanilla_transformer_forward.5} parent=0 // pred_check_branch
    %11 = sbr.rel (0) target = $region5
  $region4: #{vanilla_transformer_forward.5} parent=0 // pred_region
    _
  $region5: #{vanilla_transformer_forward.5} parent=0 // pred_fallthru
    _
  // Predicated region
  $region6: #{vanilla_transformer_forward.5} parent=0 // pred_check
    _
  $region7: #{vanilla_transformer_forward.5} parent=0 // pred_check_branch
    %13 = sbr.rel (0) target = $region9
  $region8: #{vanilla_transformer_forward.5} parent=0 // pred_region
    _
  $region9: #{vanilla_transformer_forward.5} parent=0 // pred_fallthru
    _
  // Predicated region
  $region10: #{vanilla_transformer_forward.5} parent=0 // pred_check
    _
  $region11: #{vanilla_transformer_forward.5} parent=0 // pred_check_branch
    %15 = sbr.rel (0) target = $region13
  $region12: #{vanilla_transformer_forward.5} parent=0 // pred_region
    _
  $region13: #{vanilla_transformer_forward.5} parent=0 // pred_fallthru
    _
  // Predicated region
  $region14: #{vanilla_transformer_forward.5} parent=0 // pred_check
    _
  $region15: #{vanilla_transformer_forward.5} parent=0 // pred_check_branch
    %17 = sbr.rel (0) target = $region17
  $region16: #{vanilla_transformer_forward.5} parent=0 // pred_region
    _
  $region17: #{vanilla_transformer_forward.5} parent=0 // pred_fallthru
    _
  // Predicated region
  $region18: #{vanilla_transformer_forward.5} parent=0 // pred_check
    _
  $region19: #{vanilla_transformer_forward.5} parent=0 // pred_check_branch
    %19 = sbr.rel (0) target = $region21
  $region20: #{vanilla_transformer_forward.5} parent=0 // pred_region
    _
  $region21: #{vanilla_transformer_forward.5} parent=0 // pred_fallthru
    _
  %p21 = scmp.eq.s32.totalorder 0, 0
  // Predicated region
  $region22: #{vanilla_transformer_forward.5} parent=0 // pred_check
    %p22 = pneg %p21
  $region23: #{vanilla_transformer_forward.5} parent=0 // pred_check_branch
    %24 = sbr.rel (%p22) target = $region25
  $region24: #{vanilla_transformer_forward.5} parent=0 // pred_region
    %v25 = vld [vmem:[%s0] sm:$0xff]
    %v26 = vld [vmem:[%s0 + $0x8] sm:$0xff]
    %vm27 = vcmask 261120
    %v28 = vsel %vm27, %v25, 0.0
    %29 = vadd.xlane.f32.xlu0 %v28
    %v30 = vpop.xlane.xlu0 %29
    %v31 = vsel %vm27, %v26, 0.0
    %32 = vadd.xlane.f32.xlu0 %v31
    %v33 = vpop.xlane.xlu0 %32
    %v34 = vrcp.pop 32.0
    %v35 = vmul.f32 %v30, %v34
    %v36 = vmul.f32 %v33, %v34
    %v37 = vsub.f32 %v25, %v35
    %v38 = vsub.f32 %v26, %v36
    %v39 = vmul.f32 %v37, %v37
    %v40 = vmul.f32 %v38, %v38
    %v41 = vsel %vm27, %v39, 0.0
    %42 = vadd.xlane.f32.xlu0 %v41
    %v43 = vpop.xlane.xlu0 %42
    %v44 = vsel %vm27, %v40, 0.0
    %45 = vadd.xlane.f32.xlu0 %v44
    %v46 = vpop.xlane.xlu0 %45
    %v47 = vmul.f32 %v43, %v34
    %v48 = vmul.f32 %v46, %v34
    %v49 = vadd.f32 %v47, 1e-05
    %v50 = vadd.f32 %v48, 1e-05
    %v51 = vrsqrt.pop %v49
    %v52 = vrsqrt.pop %v50
    %v53 = vmul.f32 %v37, %v51
    %v54 = vmul.f32 %v38, %v52
    %v55 = vld [vmem:[%s1] sm:$0x1]
    %v57 = vlaneseq
    %v58 = vshrl.u32 %v57, 7
    %v59 = vsub.s32 0, %v58
    %v60 = vrot.slane %v55, %v59
    %v62 = vmul.f32 %v53, %v60
    %v63 = vmul.f32 %v54, %v60
    %v64 = vld [vmem:[%s2] sm:$0x1]
    %v66 = vlaneseq
    %v67 = vshrl.u32 %v66, 7
    %v68 = vsub.s32 0, %v67
    %v69 = vrot.slane %v64, %v68
    %v71 = vadd.f32 %v62, %v69
    %v72 = vadd.f32 %v63, %v69
    %v73 = vpack.c.bf16 %v72, %v71
    %74 = vst.msk [vmem:[#allocation2] sm:$0xff] %vm27, %v73
  $region25: #{vanilla_transformer_forward.5} parent=0 // pred_fallthru
    _
  %v75 = vld [vmem:[#allocation2] sm:$0xff]
  %v76 = vld [vmem:[%s3] sm:$0xf]
  %v77 = vld [vmem:[%s3 + $0x4] sm:$0xf]
  %v78 = vld [vmem:[%s3 + $0x8] sm:$0xf]
  %v79 = vld [vmem:[%s3 + $0xc] sm:$0xf]
  %v80 = vld [vmem:[%s4] sm:$0x1]
  %v82 = vlaneseq
  %v83 = vshrl.u32 %v82, 7
  %v84 = vsub.s32 0, %v83
  %v85 = vrot.slane %v80, %v84
  %v91 = vunpack.c.l.b16 %v76
  %v92 = vunpack.c.l.b16 %v77
  %v93 = vunpack.c.l.b16 %v78
  %v94 = vunpack.c.l.b16 %v79
  %v95 = vpack.c.b16 %v92, %v91
  %v96 = vpack.c.b16 %v94, %v93
  %vm99 = vcmask 261120
  %v101 = vsel %vm99, %v75, 0
  %103 = vmatprep.subr.bf16.mxu0 0
  %104 = vmatpush1.bf16.msra.mxu0 %v95
  %105 = vmatprep.subr.bf16.mxu0 0
  %106 = vmatpush1.bf16.msra.mxu0 %v96
  %107 = vmatprep.subr.bf16.mxu0 0
  %108 = vmatpush1.bf16.msra.mxu0 0
  %109 = vmatprep.subr.bf16.mxu0 0
  %110 = vmatpush1.bf16.msra.mxu0 0
  %111 = vmatprep.subr.bf16.mxu0 0
  %112 = vmatpush1.bf16.msra.mxu0 0
  %113 = vmatprep.subr.bf16.mxu0 0
  %114 = vmatpush1.bf16.msra.mxu0 0
  %115 = vmatprep.subr.bf16.mxu0 0
  %116 = vmatpush1.bf16.msra.mxu0 0
  %117 = vmatprep.subr.bf16.mxu0 0
  %118 = vmatpush1.bf16.msra.mxu0 0
  %119 = vmatprep.subr.bf16.mxu0 0
  %120 = vmatpush1.bf16.msra.mxu0 0
  %121 = vmatprep.subr.bf16.mxu0 0
  %122 = vmatpush1.bf16.msra.mxu0 0
  %123 = vmatprep.subr.bf16.mxu0 0
  %124 = vmatpush1.bf16.msra.mxu0 0
  %125 = vmatprep.subr.bf16.mxu0 0
  %126 = vmatpush1.bf16.msra.mxu0 0
  %127 = vmatprep.subr.bf16.mxu0 0
  %128 = vmatpush1.bf16.msra.mxu0 0
  %129 = vmatprep.subr.bf16.mxu0 0
  %130 = vmatpush1.bf16.msra.mxu0 0
  %131 = vmatprep.subr.bf16.mxu0 0
  %132 = vmatpush1.bf16.msra.mxu0 0
  %133 = vmatprep.subr.bf16.mxu0 0
  %134 = vmatpush1.bf16.msra.mxu0 0
  %135 = vmatprep.mubr.bf16.mxu0 0
  %136 = vmatmul.mubr.bf16.gmra.mrb[0].mxu0 %v101
  %v137 = vpop.f32.mrb[0].mxu0
  %v138 = vadd.f32 %v85, %v137
  %v139 = vpop.f32.mrb[0].mxu0
  %v140 = vpop.f32.mrb[0].mxu0
  %v141 = vadd.f32 %v85, %v140
  %v142 = vpop.f32.mrb[0].mxu0
  %143 = vdwg.mxu0
  %v144 = vpack.c.bf16 %v141, %v138
  %v146 = vunpack.c.l.b16 %v144
  %v147 = vunpack.c.h.b16 %v144
  %v148 = vpack.c.b16 %v146, %v146
  %v149 = vpack.c.b16 %v147, %v147
  %vm152 = vcmask 781312
  %153 = vst.msk [vmem:[%s5] sm:$0xf] %vm152, %v148
  %154 = vst.msk [vmem:[%s5 + $0x4] sm:$0xf] %vm152, %v149
  // Predicated region
  $region26: #{vanilla_transformer_forward.5} parent=0 // pred_check
    _
  $region27: #{vanilla_transformer_forward.5} parent=0 // pred_check_branch
    %156 = sbr.rel (0) target = $region29
  $region28: #{vanilla_transformer_forward.5} parent=0 // pred_region
    _
  $region29: #{vanilla_transformer_forward.5} parent=0 // pred_fallthru
    _
  // Predicated region
  $region30: #{vanilla_transformer_forward.5} parent=0 // pred_check
    _
  $region31: #{vanilla_transformer_forward.5} parent=0 // pred_check_branch
    %158 = sbr.rel (0) target = $region33
  $region32: #{vanilla_transformer_forward.5} parent=0 // pred_region
    _
  $region33: #{vanilla_transformer_forward.5} parent=0 // pred_fallthru
    _

// kernel: vanilla_transformer_forward.6
$region0: #{vanilla_transformer_forward.6}
  #allocation0 [shape = 'u32[]', space=smem, size = 0x4, offset = 0x4, fixed_abs, tag = 'smem constant byte address 0x4 - core index']
  #allocation1 [shape = 'u32[144,128]{1,0:T(1,128)}', space=vmem, size = 0x12000, scoped, tag = 'internal scratch']
  %s0 = inlined_call_operand.vmem [shape: bf16[2,8,96], index: 0, kind: input, shape index: {}, may-alias: {0,1}]
  %s1 = inlined_call_operand.vmem [shape: bf16[2,8,96], index: 1, kind: input, shape index: {}, may-alias: {0,1}]
  %s2 = inlined_call_operand.vmem [shape: bf16[2,8,32], index: 2, kind: output, shape index: {}]
  %s3 = sld [smem:[#allocation0]]
  $region41: #{vanilla_transformer_forward.6} parent=0
    _
  %s5 = ssub.s32 1, %s3
  %s6 = scalar_select 0, %s5, %s3
  loop: start=0, step=1, limit=4
  $region2: #{vanilla_transformer_forward.6} parent=0 // loop_pre_header
    _
  $region3: #{vanilla_transformer_forward.6} parent=0 // loop_header
    %s8 = sphi 0, %s12
    %p9 = scmp.ge.s32.totalorder %s8, 4
    %s15 = sphi 0, %s27
    %s16 = sphi 0, %s23
    %s17 = sphi 0, %s15
    %s18 = sphi 0, %s16
    %s19 = sphi 0, %s17
    %s20 = sphi 0, %s18
    %s32 = sphi 0, %s34
    %s35 = sphi 0, %s32
    %s36 = sphi 0, %s35
    %s52 = sphi 0, %s36
    %s58 = sphi 0, %s60
    %s61 = sphi 0, %s58
    %s62 = sphi 0, %s61
    %s78 = sphi 0, %s62
    %s86 = sphi 0, %s88
    %s89 = sphi 0, %s86
    %s90 = sphi 0, %s89
    %s106 = sphi 0, %s90
  $region4: #{vanilla_transformer_forward.6} parent=0 // loop_header_branch
    %11 = sbr.rel (%p9) target = $region8
  $region5: #{vanilla_transformer_forward.6} parent=0 // loop_body
    %s13 = ssub.s32 %s8, 1
    %s14 = ssub.s32 %s8, 2
    %s21 = sadd.s32 1, %s16
    %p22 = scmp.ge.s32.totalorder %s21, 1
    %s23 = scalar_select %p22, 0, %s21
    %s24 = sadd.s32 1, %s15
    %s25 = scalar_select %p22, %s24, %s15
    %p26 = scmp.ge.s32.totalorder %s25, 2
    %s27 = scalar_select %p26, 0, %s25
    %s28 = ssub.s32 %s15, %s27
    %s29 = ssub.s32 %s16, %s23
    %s30 = sor.u32 %s28, %s29
    %p31 = scmp.eq.s32.totalorder %s30, 0
    %s33 = sadd.s32 %s32, 1
    %s34 = scalar_select %p31, %s32, %s33
    %p37 = pneg %p31
    %p38 = scmp.eq.s32.totalorder %s8, 1
    %p39 = por %p37, %p38
    %p40 = scmp.ne.s32.totalorder %s32, %s35
    %p41 = scmp.eq.s32.totalorder %s8, 0
    %p42 = por %p40, %p41
    %p43 = scmp.ne.s32.totalorder %s32, %s35
    %p44 = scmp.eq.s32.totalorder %s13, 1
    %p45 = por %p43, %p44
    %p46 = scmp.ne.s32.totalorder %s35, %s36
    %p47 = scmp.eq.s32.totalorder %s13, 0
    %p48 = por %p46, %p47
    %p49 = scmp.ne.s32.totalorder %s35, %s36
    %p50 = scmp.eq.s32.totalorder %s14, 1
    %p51 = por %p49, %p50
    %p53 = scmp.ne.s32.totalorder %s36, %s52
    %p54 = scmp.eq.s32.totalorder %s14, 0
    %p55 = por %p53, %p54
    %s56 = ssub.s32 %s15, %s27
    %p57 = scmp.eq.s32.totalorder %s56, 0
    %s59 = sadd.s32 %s58, 1
    %s60 = scalar_select %p57, %s58, %s59
    %p63 = pneg %p57
    %p64 = scmp.eq.s32.totalorder %s8, 1
    %p65 = por %p63, %p64
    %p66 = scmp.ne.s32.totalorder %s58, %s61
    %p67 = scmp.eq.s32.totalorder %s8, 0
    %p68 = por %p66, %p67
    %p69 = scmp.ne.s32.totalorder %s58, %s61
    %p70 = scmp.eq.s32.totalorder %s13, 1
    %p71 = por %p69, %p70
    %p72 = scmp.ne.s32.totalorder %s61, %s62
    %p73 = scmp.eq.s32.totalorder %s13, 0
    %p74 = por %p72, %p73
    %p75 = scmp.ne.s32.totalorder %s61, %s62
    %p76 = scmp.eq.s32.totalorder %s14, 1
    %p77 = por %p75, %p76
    %p79 = scmp.ne.s32.totalorder %s62, %s78
    %p80 = scmp.eq.s32.totalorder %s14, 0
    %p81 = por %p79, %p80
    %s82 = ssub.s32 %s15, %s27
    %s83 = ssub.s32 %s16, %s23
    %s84 = sor.u32 %s82, %s83
    %p85 = scmp.eq.s32.totalorder %s84, 0
    %s87 = sadd.s32 %s86, 1
    %s88 = scalar_select %p85, %s86, %s87
    %p91 = pneg %p85
    %p92 = scmp.eq.s32.totalorder %s8, 1
    %p93 = por %p91, %p92
    %p94 = scmp.ne.s32.totalorder %s86, %s89
    %p95 = scmp.eq.s32.totalorder %s8, 0
    %p96 = por %p94, %p95
    %p97 = scmp.ne.s32.totalorder %s86, %s89
    %p98 = scmp.eq.s32.totalorder %s13, 1
    %p99 = por %p97, %p98
    %p100 = scmp.ne.s32.totalorder %s89, %s90
    %p101 = scmp.eq.s32.totalorder %s13, 0
    %p102 = por %p100, %p101
    %p103 = scmp.ne.s32.totalorder %s89, %s90
    %p104 = scmp.eq.s32.totalorder %s14, 1
    %p105 = por %p103, %p104
    %p107 = scmp.ne.s32.totalorder %s90, %s106
    %p108 = scmp.eq.s32.totalorder %s14, 0
    %p109 = por %p107, %p108
    %p110 = scmp.le.s32.totalorder 1, %s8
    %p111 = scmp.lt.s32.totalorder %s8, 3
    %p112 = pnand %p110, %p111
    %p113 = pneg %p112
    // Predicated region
    $region9: #{vanilla_transformer_forward.6} parent=5 // pred_check
      _
    $region10: #{vanilla_transformer_forward.6} parent=5 // pred_check_branch
      %115 = sbr.rel (%p112) target = $region12
    $region11: #{vanilla_transformer_forward.6} parent=5 // pred_region
      %s116 = ssub.s32 %s8, 1
    $region12: #{vanilla_transformer_forward.6} parent=5 // pred_fallthru
      _
    %p117 = scmp.lt.s32.totalorder %s8, 2
    // Predicated region
    $region13: #{vanilla_transformer_forward.6} parent=5 // pred_check
      %p118 = pneg %p117
    $region14: #{vanilla_transformer_forward.6} parent=5 // pred_check_branch
      %120 = sbr.rel (%p118) target = $region16
    $region15: #{vanilla_transformer_forward.6} parent=5 // pred_region
      // Predicated region
      $region17: #{vanilla_transformer_forward.6} parent=15 // pred_check
        %p121 = pneg %p42
      $region18: #{vanilla_transformer_forward.6} parent=15 // pred_check_branch
        %123 = sbr.rel (%p121) target = $region20
      $region19: #{vanilla_transformer_forward.6} parent=15 // pred_region
        %p124 = scmp.lt.s32.totalorder %s15, 1
        %s125 = scalar_select %p124, %s15, 1
        %p126 = scmp.lt.s32.totalorder %s16, 0
        %s127 = scalar_select %p126, %s16, 0
        %s128 = sadd.s32 %s127, %s125
        %s129 = smul.addr %s128, 4
        %s130 = scalar_lea.vmem %s0, %s129
      $region20: #{vanilla_transformer_forward.6} parent=15 // pred_fallthru
        _
      // Predicated region
      $region21: #{vanilla_transformer_forward.6} parent=15 // pred_check
        %p131 = pneg %p68
      $region22: #{vanilla_transformer_forward.6} parent=15 // pred_check_branch
        %133 = sbr.rel (%p131) target = $region24
      $region23: #{vanilla_transformer_forward.6} parent=15 // pred_region
        %p134 = scmp.lt.s32.totalorder %s15, 1
        %s135 = scalar_select %p134, %s15, 1
        %s136 = smul.addr %s135, 4
        %s137 = scalar_lea.vmem %s1, %s136
      $region24: #{vanilla_transformer_forward.6} parent=15 // pred_fallthru
        _
    $region16: #{vanilla_transformer_forward.6} parent=5 // pred_fallthru
      _
    %p138 = scmp.le.s32.totalorder 1, %s8
    %p139 = scmp.lt.s32.totalorder %s8, 3
    %p140 = pnand %p138, %p139
    %p141 = pneg %p140
    // Predicated region
    $region25: #{vanilla_transformer_forward.6} parent=5 // pred_check
      _
    $region26: #{vanilla_transformer_forward.6} parent=5 // pred_check_branch
      %143 = sbr.rel (%p140) target = $region28
    $region27: #{vanilla_transformer_forward.6} parent=5 // pred_region
      %s144 = ssub.s32 %s8, 1
      %p145 = scmp.lt.s32.totalorder %s17, 1
      %s146 = scalar_select %p145, %s17, 1
      %p147 = scmp.lt.s32.totalorder %s18, 0
      %s148 = scalar_select %p147, %s18, 0
      %s149 = sadd.s32 %s148, %s146
      %s150 = smul.addr %s149, 4
      %s151 = scalar_lea.vmem %s0, %s150
      %p152 = pneg %p48
      %p153 = pneg %p45
      %p154 = scmp.lt.s32.totalorder %s17, 1
      %s155 = scalar_select %p154, %s17, 1
      %s156 = smul.addr %s155, 4
      %s157 = scalar_lea.vmem %s1, %s156
      %p158 = pneg %p74
      %p159 = pneg %p71
      %p160 = pneg %p102
      %p161 = pneg %p99
      %p162 = scmp.lt.s32.totalorder %s17, 1
      %s163 = scalar_select %p162, %s17, 1
      %p164 = scmp.lt.s32.totalorder %s18, 0
      %s165 = scalar_select %p164, %s18, 0
      %s166 = sadd.s32 %s165, %s163
      %s167 = smul.addr %s166, 4
      %s168 = scalar_lea.vmem %s2, %s167
      %p169 = scmp.lt.s32.totalorder %s17, 1
      %s170 = scalar_select %p169, %s17, 1
      %p171 = scmp.lt.s32.totalorder %s18, 0
      %s172 = scalar_select %p171, %s18, 0
      %s173 = sadd.s32 %s172, %s170
      %s174 = smul.addr %s173, 4
      %s175 = scalar_lea.vmem %s0, %s174
      %p176 = scmp.lt.s32.totalorder %s17, 1
      %s177 = scalar_select %p176, %s17, 1
      %s178 = smul.addr %s177, 4
      %s179 = scalar_lea.vmem %s1, %s178
      %p180 = scmp.lt.s32.totalorder %s17, 1
      %s181 = scalar_select %p180, %s17, 1
      %p182 = scmp.lt.s32.totalorder %s18, 0
      %s183 = scalar_select %p182, %s18, 0
      %s184 = sadd.s32 %s183, %s181
      %s185 = smul.addr %s184, 4
      %s186 = scalar_lea.vmem %s2, %s185
      %v188 = vld [vmem:[%s175] sm:$0xf]
      %v189 = vld [vmem:[%s179] sm:$0xf]
      %s190 = smul.u32 %s18, 8
      %v191 = vlaneseq
      %v192 = vshrl.u32 %v191, 7
      %v193 = vstv %s190
      %v194 = vadd.s32 %v193, %v192
      %v195 = vlaneseq
      %v196 = vand.u32 %v195, 127
      %vm197 = vcmp.le.s32.totalorder %v196, %v194
      %v199 = vunpack.c.l.b16 %v189
      %v200 = vpack.c.b16 %v199, %v199
      %201 = vrot.lane.b32.xlu0 %v200, 96
      %v202 = vpop.permute.xlu0 %201
      %vm203 = vcmask 64512
      %v205 = vsel %vm203, %v188, 0
      %v208 = vsel %vm203, %v202, 0
      %210 = vmatprep.subr.bf16.mxu0 0
      %211 = vmatpush1.bf16.xpose.msra.mxu0 %v208
      %212 = vmatprep.subr.bf16.mxu0 0
      %213 = vmatpush1.bf16.xpose.msra.mxu0 0
      %214 = vmatprep.subr.bf16.mxu0 0
      %215 = vmatpush1.bf16.xpose.msra.mxu0 0
      %216 = vmatprep.subr.bf16.mxu0 0
      %217 = vmatpush1.bf16.xpose.msra.mxu0 0
      %218 = vmatprep.subr.bf16.mxu0 0
      %219 = vmatpush1.bf16.xpose.msra.mxu0 0
      %220 = vmatprep.subr.bf16.mxu0 0
      %221 = vmatpush1.bf16.xpose.msra.mxu0 0
      %222 = vmatprep.subr.bf16.mxu0 0
      %223 = vmatpush1.bf16.xpose.msra.mxu0 0
      %224 = vmatprep.subr.bf16.mxu0 0
      %225 = vmatpush1.bf16.xpose.msra.mxu0 0
      %226 = vmatprep.subr.bf16.mxu0 0
      %227 = vmatpush1.bf16.xpose.msra.mxu0 0
      %228 = vmatprep.subr.bf16.mxu0 0
      %229 = vmatpush1.bf16.xpose.msra.mxu0 0
      %230 = vmatprep.subr.bf16.mxu0 0
      %231 = vmatpush1.bf16.xpose.msra.mxu0 0
      %232 = vmatprep.subr.bf16.mxu0 0
      %233 = vmatpush1.bf16.xpose.msra.mxu0 0
      %234 = vmatprep.subr.bf16.mxu0 0
      %235 = vmatpush1.bf16.xpose.msra.mxu0 0
      %236 = vmatprep.subr.bf16.mxu0 0
      %237 = vmatpush1.bf16.xpose.msra.mxu0 0
      %238 = vmatprep.subr.bf16.mxu0 0
      %239 = vmatpush1.bf16.xpose.msra.mxu0 0
      %240 = vmatprep.subr.bf16.mxu0 0
      %241 = vmatpush1.bf16.xpose.msra.mxu0 0
      %242 = vmatprep.mubr.bf16.mxu0 0
      %243 = vmatmul.mubr.bf16.gmra.mrb[0].mxu0 %v205
      %v244 = vpop.f32.mrb[0].mxu0
      %v245 = vadd.f32 0.0, %v244
      %v246 = vpop.f32.mrb[0].mxu0
      %v247 = vpop.f32.mrb[0].mxu0
      %v248 = vpop.f32.mrb[0].mxu0
      %249 = vdwg.mxu0
      %v250 = vmul.f32 %v245, 0.35355338
      %v251 = vsel %vm197, %v250, -1e+30
      %v252 = vsel %vm203, %v251, -inf
      %253 = vmax.xlane.f32.xlu0 %v252
      %v254 = vpop.xlane.xlu0 %253
      %v255 = vsub.f32 %v251, %v254
      %v256 = vmul.f32 %v255, 1.442695
      %v257 = vpow.pop %v256
      %v258 = vsel %vm203, %v257, 0.0
      %259 = vadd.xlane.f32.xlu0 %v258
      %v260 = vpop.xlane.xlu0 %259
      %v261 = vrcp.pop %v260
      %v262 = vmul.f32 %v257, %v261
      %v263 = vpack.c.bf16 %v262, %v262
      %264 = vrot.lane.b32.xlu0 %v200, 64
      %v265 = vpop.permute.xlu0 %264
      %v267 = vsel %vm203, %v263, 0
      %vm269 = vcmask 1043456
      %v271 = vsel %vm269, %v265, 0
      %273 = vmatprep.subr.bf16.mxu0 0
      %274 = vmatpush1.bf16.msra.mxu0 %v271
      %275 = vmatprep.subr.bf16.mxu0 0
      %276 = vmatpush1.bf16.msra.mxu0 0
      %277 = vmatprep.subr.bf16.mxu0 0
      %278 = vmatpush1.bf16.msra.mxu0 0
      %279 = vmatprep.subr.bf16.mxu0 0
      %280 = vmatpush1.bf16.msra.mxu0 0
      %281 = vmatprep.subr.bf16.mxu0 0
      %282 = vmatpush1.bf16.msra.mxu0 0
      %283 = vmatprep.subr.bf16.mxu0 0
      %284 = vmatpush1.bf16.msra.mxu0 0
      %285 = vmatprep.subr.bf16.mxu0 0
      %286 = vmatpush1.bf16.msra.mxu0 0
      %287 = vmatprep.subr.bf16.mxu0 0
      %288 = vmatpush1.bf16.msra.mxu0 0
      %289 = vmatprep.subr.bf16.mxu0 0
      %290 = vmatpush1.bf16.msra.mxu0 0
      %291 = vmatprep.subr.bf16.mxu0 0
      %292 = vmatpush1.bf16.msra.mxu0 0
      %293 = vmatprep.subr.bf16.mxu0 0
      %294 = vmatpush1.bf16.msra.mxu0 0
      %295 = vmatprep.subr.bf16.mxu0 0
      %296 = vmatpush1.bf16.msra.mxu0 0
      %297 = vmatprep.subr.bf16.mxu0 0
      %298 = vmatpush1.bf16.msra.mxu0 0
      %299 = vmatprep.subr.bf16.mxu0 0
      %300 = vmatpush1.bf16.msra.mxu0 0
      %301 = vmatprep.subr.bf16.mxu0 0
      %302 = vmatpush1.bf16.msra.mxu0 0
      %303 = vmatprep.subr.bf16.mxu0 0
      %304 = vmatpush1.bf16.msra.mxu0 0
      %305 = vmatprep.mubr.bf16.mxu0 0
      %306 = vmatmul.mubr.bf16.gmra.mrb[0].mxu0 %v267
      %v307 = vpop.f32.mrb[0].mxu0
      %v308 = vadd.f32 0.0, %v307
      %v309 = vpop.f32.mrb[0].mxu0
      %v310 = vpop.f32.mrb[0].mxu0
      %v311 = vpop.f32.mrb[0].mxu0
      %312 = vdwg.mxu0
      %v314 = vunpack.c.l.b16 %v188
      %v315 = vpack.c.b16 %v314, %v314
      %316 = vrot.lane.b32.xlu0 %v315, 120
      %v317 = vpop.permute.xlu0 %316
      %318 = vrot.lane.b32.xlu0 %v200, 88
      %v319 = vpop.permute.xlu0 %318
      %v321 = vsel %vm203, %v317, 0
      %v324 = vsel %vm203, %v319, 0
      %326 = vmatprep.subr.bf16.mxu0 0
      %327 = vmatpush1.bf16.xpose.msra.mxu0 %v324
      %328 = vmatprep.subr.bf16.mxu0 0
      %329 = vmatpush1.bf16.xpose.msra.mxu0 0
      %330 = vmatprep.subr.bf16.mxu0 0
      %331 = vmatpush1.bf16.xpose.msra.mxu0 0
      %332 = vmatprep.subr.bf16.mxu0 0
      %333 = vmatpush1.bf16.xpose.msra.mxu0 0
      %334 = vmatprep.subr.bf16.mxu0 0
      %335 = vmatpush1.bf16.xpose.msra.mxu0 0
      %336 = vmatprep.subr.bf16.mxu0 0
      %337 = vmatpush1.bf16.xpose.msra.mxu0 0
      %338 = vmatprep.subr.bf16.mxu0 0
      %339 = vmatpush1.bf16.xpose.msra.mxu0 0
      %340 = vmatprep.subr.bf16.mxu0 0
      %341 = vmatpush1.bf16.xpose.msra.mxu0 0
      %342 = vmatprep.subr.bf16.mxu0 0
      %343 = vmatpush1.bf16.xpose.msra.mxu0 0
      %344 = vmatprep.subr.bf16.mxu0 0
      %345 = vmatpush1.bf16.xpose.msra.mxu0 0
      %346 = vmatprep.subr.bf16.mxu0 0
      %347 = vmatpush1.bf16.xpose.msra.mxu0 0
      %348 = vmatprep.subr.bf16.mxu0 0
      %349 = vmatpush1.bf16.xpose.msra.mxu0 0
      %350 = vmatprep.subr.bf16.mxu0 0
      %351 = vmatpush1.bf16.xpose.msra.mxu0 0
      %352 = vmatprep.subr.bf16.mxu0 0
      %353 = vmatpush1.bf16.xpose.msra.mxu0 0
      %354 = vmatprep.subr.bf16.mxu0 0
      %355 = vmatpush1.bf16.xpose.msra.mxu0 0
      %356 = vmatprep.subr.bf16.mxu0 0
      %357 = vmatpush1.bf16.xpose.msra.mxu0 0
      %358 = vmatprep.mubr.bf16.mxu0 0
      %359 = vmatmul.mubr.bf16.gmra.mrb[0].mxu0 %v321
      %v360 = vpop.f32.mrb[0].mxu0
      %v361 = vadd.f32 0.0, %v360
      %v362 = vpop.f32.mrb[0].mxu0
      %v363 = vpop.f32.mrb[0].mxu0
      %v364 = vpop.f32.mrb[0].mxu0
      %365 = vdwg.mxu0
      %v366 = vmul.f32 %v361, 0.35355338
      %v367 = vsel %vm197, %v366, -1e+30
      %v368 = vsel %vm203, %v367, -inf
      %369 = vmax.xlane.f32.xlu0 %v368
      %v370 = vpop.xlane.xlu0 %369
      %v371 = vsub.f32 %v367, %v370
      %v372 = vmul.f32 %v371, 1.442695
      %v373 = vpow.pop %v372
      %v374 = vsel %vm203, %v373, 0.0
      %375 = vadd.xlane.f32.xlu0 %v374
      %v376 = vpop.xlane.xlu0 %375
      %v377 = vrcp.pop %v376
      %v378 = vmul.f32 %v373, %v377
      %v379 = vpack.c.bf16 %v378, %v378
      %380 = vrot.lane.b32.xlu0 %v200, 56
      %v381 = vpop.permute.xlu0 %380
      %v383 = vsel %vm203, %v379, 0
      %v386 = vsel %vm269, %v381, 0
      %388 = vmatprep.subr.bf16.mxu0 0
      %389 = vmatpush1.bf16.msra.mxu0 %v386
      %390 = vmatprep.subr.bf16.mxu0 0
      %391 = vmatpush1.bf16.msra.mxu0 0
      %392 = vmatprep.subr.bf16.mxu0 0
      %393 = vmatpush1.bf16.msra.mxu0 0
      %394 = vmatprep.subr.bf16.mxu0 0
      %395 = vmatpush1.bf16.msra.mxu0 0
      %396 = vmatprep.subr.bf16.mxu0 0
      %397 = vmatpush1.bf16.msra.mxu0 0
      %398 = vmatprep.subr.bf16.mxu0 0
      %399 = vmatpush1.bf16.msra.mxu0 0
      %400 = vmatprep.subr.bf16.mxu0 0
      %401 = vmatpush1.bf16.msra.mxu0 0
      %402 = vmatprep.subr.bf16.mxu0 0
      %403 = vmatpush1.bf16.msra.mxu0 0
      %404 = vmatprep.subr.bf16.mxu0 0
      %405 = vmatpush1.bf16.msra.mxu0 0
      %406 = vmatprep.subr.bf16.mxu0 0
      %407 = vmatpush1.bf16.msra.mxu0 0
      %408 = vmatprep.subr.bf16.mxu0 0
      %409 = vmatpush1.bf16.msra.mxu0 0
      %410 = vmatprep.subr.bf16.mxu0 0
      %411 = vmatpush1.bf16.msra.mxu0 0
      %412 = vmatprep.subr.bf16.mxu0 0
      %413 = vmatpush1.bf16.msra.mxu0 0
      %414 = vmatprep.subr.bf16.mxu0 0
      %415 = vmatpush1.bf16.msra.mxu0 0
      %416 = vmatprep.subr.bf16.mxu0 0
      %417 = vmatpush1.bf16.msra.mxu0 0
      %418 = vmatprep.subr.bf16.mxu0 0
      %419 = vmatpush1.bf16.msra.mxu0 0
      %420 = vmatprep.mubr.bf16.mxu0 0
      %421 = vmatmul.mubr.bf16.gmra.mrb[0].mxu0 %v383
      %v422 = vpop.f32.mrb[0].mxu0
      %v423 = vadd.f32 0.0, %v422
      %v424 = vpop.f32.mrb[0].mxu0
      %v425 = vpop.f32.mrb[0].mxu0
      %v426 = vpop.f32.mrb[0].mxu0
      %427 = vdwg.mxu0
      %428 = vrot.lane.b32.xlu0 %v315, 112
      %v429 = vpop.permute.xlu0 %428
      %430 = vrot.lane.b32.xlu0 %v200, 80
      %v431 = vpop.permute.xlu0 %430
      %v433 = vsel %vm203, %v429, 0
      %v436 = vsel %vm203, %v431, 0
      %438 = vmatprep.subr.bf16.mxu0 0
      %439 = vmatpush1.bf16.xpose.msra.mxu0 %v436
      %440 = vmatprep.subr.bf16.mxu0 0
      %441 = vmatpush1.bf16.xpose.msra.mxu0 0
      %442 = vmatprep.subr.bf16.mxu0 0
      %443 = vmatpush1.bf16.xpose.msra.mxu0 0
      %444 = vmatprep.subr.bf16.mxu0 0
      %445 = vmatpush1.bf16.xpose.msra.mxu0 0
      %446 = vmatprep.subr.bf16.mxu0 0
      %447 = vmatpush1.bf16.xpose.msra.mxu0 0
      %448 = vmatprep.subr.bf16.mxu0 0
      %449 = vmatpush1.bf16.xpose.msra.mxu0 0
      %450 = vmatprep.subr.bf16.mxu0 0
      %451 = vmatpush1.bf16.xpose.msra.mxu0 0
      %452 = vmatprep.subr.bf16.mxu0 0
      %453 = vmatpush1.bf16.xpose.msra.mxu0 0
      %454 = vmatprep.subr.bf16.mxu0 0
      %455 = vmatpush1.bf16.xpose.msra.mxu0 0
      %456 = vmatprep.subr.bf16.mxu0 0
      %457 = vmatpush1.bf16.xpose.msra.mxu0 0
      %458 = vmatprep.subr.bf16.mxu0 0
      %459 = vmatpush1.bf16.xpose.msra.mxu0 0
      %460 = vmatprep.subr.bf16.mxu0 0
      %461 = vmatpush1.bf16.xpose.msra.mxu0 0
      %462 = vmatprep.subr.bf16.mxu0 0
      %463 = vmatpush1.bf16.xpose.msra.mxu0 0
      %464 = vmatprep.subr.bf16.mxu0 0
      %465 = vmatpush1.bf16.xpose.msra.mxu0 0
      %466 = vmatprep.subr.bf16.mxu0 0
      %467 = vmatpush1.bf16.xpose.msra.mxu0 0
      %468 = vmatprep.subr.bf16.mxu0 0
      %469 = vmatpush1.bf16.xpose.msra.mxu0 0
      %470 = vmatprep.mubr.bf16.mxu0 0
      %471 = vmatmul.mubr.bf16.gmra.mrb[0].mxu0 %v433
      %v472 = vpop.f32.mrb[0].mxu0
      %v473 = vadd.f32 0.0, %v472
      %v474 = vpop.f32.mrb[0].mxu0
      %v475 = vpop.f32.mrb[0].mxu0
      %v476 = vpop.f32.mrb[0].mxu0
      %477 = vdwg.mxu0
      %v478 = vmul.f32 %v473, 0.35355338
      %v479 = vsel %vm197, %v478, -1e+30
      %v480 = vsel %vm203, %v479, -inf
      %481 = vmax.xlane.f32.xlu0 %v480
      %v482 = vpop.xlane.xlu0 %481
      %v483 = vsub.f32 %v479, %v482
      %v484 = vmul.f32 %v483, 1.442695
      %v485 = vpow.pop %v484
      %v486 = vsel %vm203, %v485, 0.0
      %487 = vadd.xlane.f32.xlu0 %v486
      %v488 = vpop.xlane.xlu0 %487
      %v489 = vrcp.pop %v488
      %v490 = vmul.f32 %v485, %v489
      %v491 = vpack.c.bf16 %v490, %v490
      %492 = vrot.lane.b32.xlu0 %v200, 48
      %v493 = vpop.permute.xlu0 %492
      %v495 = vsel %vm203, %v491, 0
      %v498 = vsel %vm269, %v493, 0
      %500 = vmatprep.subr.bf16.mxu0 0
      %501 = vmatpush1.bf16.msra.mxu0 %v498
      %502 = vmatprep.subr.bf16.mxu0 0
      %503 = vmatpush1.bf16.msra.mxu0 0
      %504 = vmatprep.subr.bf16.mxu0 0
      %505 = vmatpush1.bf16.msra.mxu0 0
      %506 = vmatprep.subr.bf16.mxu0 0
      %507 = vmatpush1.bf16.msra.mxu0 0
      %508 = vmatprep.subr.bf16.mxu0 0
      %509 = vmatpush1.bf16.msra.mxu0 0
      %510 = vmatprep.subr.bf16.mxu0 0
      %511 = vmatpush1.bf16.msra.mxu0 0
      %512 = vmatprep.subr.bf16.mxu0 0
      %513 = vmatpush1.bf16.msra.mxu0 0
      %514 = vmatprep.subr.bf16.mxu0 0
      %515 = vmatpush1.bf16.msra.mxu0 0
      %516 = vmatprep.subr.bf16.mxu0 0
      %517 = vmatpush1.bf16.msra.mxu0 0
      %518 = vmatprep.subr.bf16.mxu0 0
      %519 = vmatpush1.bf16.msra.mxu0 0
      %520 = vmatprep.subr.bf16.mxu0 0
      %521 = vmatpush1.bf16.msra.mxu0 0
      %522 = vmatprep.subr.bf16.mxu0 0
      %523 = vmatpush1.bf16.msra.mxu0 0
      %524 = vmatprep.subr.bf16.mxu0 0
      %525 = vmatpush1.bf16.msra.mxu0 0
      %526 = vmatprep.subr.bf16.mxu0 0
      %527 = vmatpush1.bf16.msra.mxu0 0
      %528 = vmatprep.subr.bf16.mxu0 0
      %529 = vmatpush1.bf16.msra.mxu0 0
      %530 = vmatprep.subr.bf16.mxu0 0
      %531 = vmatpush1.bf16.msra.mxu0 0
      %532 = vmatprep.mubr.bf16.mxu0 0
      %533 = vmatmul.mubr.bf16.gmra.mrb[0].mxu0 %v495
      %v534 = vpop.f32.mrb[0].mxu0
      %v535 = vadd.f32 0.0, %v534
      %v536 = vpop.f32.mrb[0].mxu0
      %v537 = vpop.f32.mrb[0].mxu0
      %v538 = vpop.f32.mrb[0].mxu0
      %539 = vdwg.mxu0
      %540 = vrot.lane.b32.xlu0 %v315, 104
      %v541 = vpop.permute.xlu0 %540
      %542 = vrot.lane.b32.xlu0 %v200, 72
      %v543 = vpop.permute.xlu0 %542
      %v545 = vsel %vm203, %v541, 0
      %v548 = vsel %vm203, %v543, 0
      %550 = vmatprep.subr.bf16.mxu0 0
      %551 = vmatpush1.bf16.xpose.msra.mxu0 %v548
      %552 = vmatprep.subr.bf16.mxu0 0
      %553 = vmatpush1.bf16.xpose.msra.mxu0 0
      %554 = vmatprep.subr.bf16.mxu0 0
      %555 = vmatpush1.bf16.xpose.msra.mxu0 0
      %556 = vmatprep.subr.bf16.mxu0 0
      %557 = vmatpush1.bf16.xpose.msra.mxu0 0
      %558 = vmatprep.subr.bf16.mxu0 0
      %559 = vmatpush1.bf16.xpose.msra.mxu0 0
      %560 = vmatprep.subr.bf16.mxu0 0
      %561 = vmatpush1.bf16.xpose.msra.mxu0 0
      %562 = vmatprep.subr.bf16.mxu0 0
      %563 = vmatpush1.bf16.xpose.msra.mxu0 0
      %564 = vmatprep.subr.bf16.mxu0 0
      %565 = vmatpush1.bf16.xpose.msra.mxu0 0
      %566 = vmatprep.subr.bf16.mxu0 0
      %567 = vmatpush1.bf16.xpose.msra.mxu0 0
      %568 = vmatprep.subr.bf16.mxu0 0
      %569 = vmatpush1.bf16.xpose.msra.mxu0 0
      %570 = vmatprep.subr.bf16.mxu0 0
      %571 = vmatpush1.bf16.xpose.msra.mxu0 0
      %572 = vmatprep.subr.bf16.mxu0 0
      %573 = vmatpush1.bf16.xpose.msra.mxu0 0
      %574 = vmatprep.subr.bf16.mxu0 0
      %575 = vmatpush1.bf16.xpose.msra.mxu0 0
      %576 = vmatprep.subr.bf16.mxu0 0
      %577 = vmatpush1.bf16.xpose.msra.mxu0 0
      %578 = vmatprep.subr.bf16.mxu0 0
      %579 = vmatpush1.bf16.xpose.msra.mxu0 0
      %580 = vmatprep.subr.bf16.mxu0 0
      %581 = vmatpush1.bf16.xpose.msra.mxu0 0
      %582 = vmatprep.mubr.bf16.mxu0 0
      %583 = vmatmul.mubr.bf16.gmra.mrb[0].mxu0 %v545
      %v584 = vpop.f32.mrb[0].mxu0
      %v585 = vadd.f32 0.0, %v584
      %v586 = vpop.f32.mrb[0].mxu0
      %v587 = vpop.f32.mrb[0].mxu0
      %v588 = vpop.f32.mrb[0].mxu0
      %589 = vdwg.mxu0
      %v590 = vmul.f32 %v585, 0.35355338
      %v591 = vsel %vm197, %v590, -1e+30
      %v592 = vsel %vm203, %v591, -inf
      %593 = vmax.xlane.f32.xlu0 %v592
      %v594 = vpop.xlane.xlu0 %593
      %v595 = vsub.f32 %v591, %v594
      %v596 = vmul.f32 %v595, 1.442695
      %v597 = vpow.pop %v596
      %v598 = vsel %vm203, %v597, 0.0
      %599 = vadd.xlane.f32.xlu0 %v598
      %v600 = vpop.xlane.xlu0 %599
      %v601 = vrcp.pop %v600
      %v602 = vmul.f32 %v597, %v601
      %v603 = vpack.c.bf16 %v602, %v602
      %604 = vrot.lane.b32.xlu0 %v200, 40
      %v605 = vpop.permute.xlu0 %604
      %v607 = vsel %vm203, %v603, 0
      %v610 = vsel %vm269, %v605, 0
      %612 = vmatprep.subr.bf16.mxu0 0
      %613 = vmatpush1.bf16.msra.mxu0 %v610
      %614 = vmatprep.subr.bf16.mxu0 0
      %615 = vmatpush1.bf16.msra.mxu0 0
      %616 = vmatprep.subr.bf16.mxu0 0
      %617 = vmatpush1.bf16.msra.mxu0 0
      %618 = vmatprep.subr.bf16.mxu0 0
      %619 = vmatpush1.bf16.msra.mxu0 0
      %620 = vmatprep.subr.bf16.mxu0 0
      %621 = vmatpush1.bf16.msra.mxu0 0
      %622 = vmatprep.subr.bf16.mxu0 0
      %623 = vmatpush1.bf16.msra.mxu0 0
      %624 = vmatprep.subr.bf16.mxu0 0
      %625 = vmatpush1.bf16.msra.mxu0 0
      %626 = vmatprep.subr.bf16.mxu0 0
      %627 = vmatpush1.bf16.msra.mxu0 0
      %628 = vmatprep.subr.bf16.mxu0 0
      %629 = vmatpush1.bf16.msra.mxu0 0
      %630 = vmatprep.subr.bf16.mxu0 0
      %631 = vmatpush1.bf16.msra.mxu0 0
      %632 = vmatprep.subr.bf16.mxu0 0
      %633 = vmatpush1.bf16.msra.mxu0 0
      %634 = vmatprep.subr.bf16.mxu0 0
      %635 = vmatpush1.bf16.msra.mxu0 0
      %636 = vmatprep.subr.bf16.mxu0 0
      %637 = vmatpush1.bf16.msra.mxu0 0
      %638 = vmatprep.subr.bf16.mxu0 0
      %639 = vmatpush1.bf16.msra.mxu0 0
      %640 = vmatprep.subr.bf16.mxu0 0
      %641 = vmatpush1.bf16.msra.mxu0 0
      %642 = vmatprep.subr.bf16.mxu0 0
      %643 = vmatpush1.bf16.msra.mxu0 0
      %644 = vmatprep.mubr.bf16.mxu0 0
      %645 = vmatmul.mubr.bf16.gmra.mrb[0].mxu0 %v607
      %v646 = vpop.f32.mrb[0].mxu0
      %v647 = vadd.f32 0.0, %v646
      %v648 = vpop.f32.mrb[0].mxu0
      %v649 = vpop.f32.mrb[0].mxu0
      %v650 = vpop.f32.mrb[0].mxu0
      %651 = vdwg.mxu0
      %653 = vrot.lane.b32.xlu0 %v423, 8
      %v654 = vpop.permute.xlu0 %653
      %657 = vrot.lane.b32.xlu0 %v535, 16
      %v658 = vpop.permute.xlu0 %657
      %661 = vrot.lane.b32.xlu0 %v647, 24
      %v662 = vpop.permute.xlu0 %661
      %v664 = vsel %vm203, %v308, %v654
      %vm665 = vcmask 130048
      %v666 = vsel %vm665, %v664, %v658
      %vm667 = vcmask 195584
      %v668 = vsel %vm667, %v666, %v662
      %v669 = vpack.c.bf16 %v668, %v668
      %vm670 = vcmask 257024
      %671 = vst.msk [vmem:[%s186] sm:$0xf] %vm670, %v669
      %p672 = scmp.lt.s32.totalorder %s17, 1
      %s673 = scalar_select %p672, %s17, 1
      %p674 = scmp.lt.s32.totalorder %s18, 0
      %s675 = scalar_select %p674, %s18, 0
      %s676 = sadd.s32 %s675, %s673
      %s677 = smul.addr %s676, 4
      %s678 = scalar_lea.vmem %s2, %s677
      // Predicated region
      $region29: #{vanilla_transformer_forward.6} parent=27 // pred_check
        %p679 = pneg %p99
      $region30: #{vanilla_transformer_forward.6} parent=27 // pred_check_branch
        %681 = sbr.rel (%p679) target = $region32
      $region31: #{vanilla_transformer_forward.6} parent=27 // pred_region
        _
      $region32: #{vanilla_transformer_forward.6} parent=27 // pred_fallthru
        _
    $region28: #{vanilla_transformer_forward.6} parent=5 // pred_fallthru
      _
    %p682 = scmp.le.s32.totalorder 2, %s8
    // Predicated region
    $region33: #{vanilla_transformer_forward.6} parent=5 // pred_check
      %p683 = pneg %p682
    $region34: #{vanilla_transformer_forward.6} parent=5 // pred_check_branch
      %685 = sbr.rel (%p683) target = $region36
    $region35: #{vanilla_transformer_forward.6} parent=5 // pred_region
      %s686 = ssub.s32 %s8, 2
      // Predicated region
      $region37: #{vanilla_transformer_forward.6} parent=35 // pred_check
        %p687 = pneg %p105
      $region38: #{vanilla_transformer_forward.6} parent=35 // pred_check_branch
        %689 = sbr.rel (%p687) target = $region40
      $region39: #{vanilla_transformer_forward.6} parent=35 // pred_region
        %p690 = scmp.lt.s32.totalorder %s19, 1
        %s691 = scalar_select %p690, %s19, 1
        %p692 = scmp.lt.s32.totalorder %s20, 0
        %s693 = scalar_select %p692, %s20, 0
        %s694 = sadd.s32 %s693, %s691
        %s695 = smul.addr %s694, 4
        %s696 = scalar_lea.vmem %s2, %s695
      $region40: #{vanilla_transformer_forward.6} parent=35 // pred_fallthru
        _
    $region36: #{vanilla_transformer_forward.6} parent=5 // pred_fallthru
      _
  $region6: #{vanilla_transformer_forward.6} parent=0 // loop_footer
    %s12 = sadd.s32 1, %s8
  $region7: #{vanilla_transformer_forward.6} parent=0 // loop_footer_branch
    %7 = sbr.rel target = $region3
  $region8: #{vanilla_transformer_forward.6} parent=0 // loop_exit
    _

// kernel: vanilla_transformer_forward.8
$region0: #{vanilla_transformer_forward.8}
  #allocation0 [shape = 'u32[]', space=smem, size = 0x4, offset = 0x4, fixed_abs, tag = 'smem constant byte address 0x4 - core index']
  #allocation1 [shape = 'u32[144,128]{1,0:T(1,128)}', space=vmem, size = 0x12000, scoped, tag = 'internal scratch']
  #allocation2 [shape = 'f32[16,32]{1,0:T(8,128)}', space=vmem, size = 0x2000, scoped, tag = 'scratch operand']
  #allocation3 [shape = 'bf16[16,32]{1,0:T(16,128)(2,1)}', space=vmem, size = 0x1000, scoped, tag = 'scratch operand']
  %s0 = inlined_call_operand.vmem [shape: f32[16,32], index: 0, kind: input, shape index: {}]
  %s1 = inlined_call_operand.vmem [shape: f32[1,32], index: 1, kind: input, shape index: {}]
  %s2 = inlined_call_operand.vmem [shape: f32[1,32], index: 2, kind: input, shape index: {}]
  %s3 = inlined_call_operand.vmem [shape: bf16[32,128], index: 3, kind: input, shape index: {}]
  %s4 = inlined_call_operand.vmem [shape: f32[1,128], index: 4, kind: input, shape index: {}]
  %s5 = inlined_call_operand.vmem [shape: bf16[128,32], index: 5, kind: input, shape index: {}]
  %s6 = inlined_call_operand.vmem [shape: f32[1,32], index: 6, kind: input, shape index: {}]
  %s7 = inlined_call_operand.vmem [shape: f32[16,32], index: 7, kind: output, shape index: {}]
  %s8 = sld [smem:[#allocation0]]
  $region46: #{vanilla_transformer_forward.8} parent=0
    _
  %s10 = ssub.s32 1, %s8
  %s11 = scalar_select 0, %s10, %s8
  // Predicated region
  $region2: #{vanilla_transformer_forward.8} parent=0 // pred_check
    _
  $region3: #{vanilla_transformer_forward.8} parent=0 // pred_check_branch
    %13 = sbr.rel (0) target = $region5
  $region4: #{vanilla_transformer_forward.8} parent=0 // pred_region
    _
  $region5: #{vanilla_transformer_forward.8} parent=0 // pred_fallthru
    _
  // Predicated region
  $region6: #{vanilla_transformer_forward.8} parent=0 // pred_check
    _
  $region7: #{vanilla_transformer_forward.8} parent=0 // pred_check_branch
    %15 = sbr.rel (0) target = $region9
  $region8: #{vanilla_transformer_forward.8} parent=0 // pred_region
    _
  $region9: #{vanilla_transformer_forward.8} parent=0 // pred_fallthru
    _
  // Predicated region
  $region10: #{vanilla_transformer_forward.8} parent=0 // pred_check
    _
  $region11: #{vanilla_transformer_forward.8} parent=0 // pred_check_branch
    %17 = sbr.rel (0) target = $region13
  $region12: #{vanilla_transformer_forward.8} parent=0 // pred_region
    _
  $region13: #{vanilla_transformer_forward.8} parent=0 // pred_fallthru
    _
  // Predicated region
  $region14: #{vanilla_transformer_forward.8} parent=0 // pred_check
    _
  $region15: #{vanilla_transformer_forward.8} parent=0 // pred_check_branch
    %19 = sbr.rel (0) target = $region17
  $region16: #{vanilla_transformer_forward.8} parent=0 // pred_region
    _
  $region17: #{vanilla_transformer_forward.8} parent=0 // pred_fallthru
    _
  // Predicated region
  $region18: #{vanilla_transformer_forward.8} parent=0 // pred_check
    _
  $region19: #{vanilla_transformer_forward.8} parent=0 // pred_check_branch
    %21 = sbr.rel (0) target = $region21
  $region20: #{vanilla_transformer_forward.8} parent=0 // pred_region
    _
  $region21: #{vanilla_transformer_forward.8} parent=0 // pred_fallthru
    _
  // Predicated region
  $region22: #{vanilla_transformer_forward.8} parent=0 // pred_check
    _
  $region23: #{vanilla_transformer_forward.8} parent=0 // pred_check_branch
    %23 = sbr.rel (0) target = $region25
  $region24: #{vanilla_transformer_forward.8} parent=0 // pred_region
    _
  $region25: #{vanilla_transformer_forward.8} parent=0 // pred_fallthru
    _
  // Predicated region
  $region26: #{vanilla_transformer_forward.8} parent=0 // pred_check
    _
  $region27: #{vanilla_transformer_forward.8} parent=0 // pred_check_branch
    %25 = sbr.rel (0) target = $region29
  $region28: #{vanilla_transformer_forward.8} parent=0 // pred_region
    _
  $region29: #{vanilla_transformer_forward.8} parent=0 // pred_fallthru
    _
  %p27 = scmp.eq.s32.totalorder 0, 0
  // Predicated region
  $region30: #{vanilla_transformer_forward.8} parent=0 // pred_check
    %p28 = pneg %p27
  $region31: #{vanilla_transformer_forward.8} parent=0 // pred_check_branch
    %30 = sbr.rel (%p28) target = $region33
  $region32: #{vanilla_transformer_forward.8} parent=0 // pred_region
    %v31 = vld [vmem:[%s0] sm:$0xff]
    %v32 = vld [vmem:[%s0 + $0x8] sm:$0xff]
    %vm33 = vcmask 261120
    %v34 = vsel %vm33, %v31, 0.0
    %35 = vadd.xlane.f32.xlu0 %v34
    %v36 = vpop.xlane.xlu0 %35
    %v37 = vsel %vm33, %v32, 0.0
    %38 = vadd.xlane.f32.xlu0 %v37
    %v39 = vpop.xlane.xlu0 %38
    %v40 = vrcp.pop 32.0
    %v41 = vmul.f32 %v36, %v40
    %v42 = vmul.f32 %v39, %v40
    %v43 = vsub.f32 %v31, %v41
    %v44 = vsub.f32 %v32, %v42
    %v45 = vmul.f32 %v43, %v43
    %v46 = vmul.f32 %v44, %v44
    %v47 = vsel %vm33, %v45, 0.0
    %48 = vadd.xlane.f32.xlu0 %v47
    %v49 = vpop.xlane.xlu0 %48
    %v50 = vsel %vm33, %v46, 0.0
    %51 = vadd.xlane.f32.xlu0 %v50
    %v52 = vpop.xlane.xlu0 %51
    %v53 = vmul.f32 %v49, %v40
    %v54 = vmul.f32 %v52, %v40
    %v55 = vadd.f32 %v53, 1e-05
    %v56 = vadd.f32 %v54, 1e-05
    %v57 = vrsqrt.pop %v55
    %v58 = vrsqrt.pop %v56
    %v59 = vmul.f32 %v43, %v57
    %v60 = vmul.f32 %v44, %v58
    %v61 = vld [vmem:[%s1] sm:$0x1]
    %v63 = vlaneseq
    %v64 = vshrl.u32 %v63, 7
    %v65 = vsub.s32 0, %v64
    %v66 = vrot.slane %v61, %v65
    %v68 = vmul.f32 %v59, %v66
    %v69 = vmul.f32 %v60, %v66
    %v70 = vld [vmem:[%s2] sm:$0x1]
    %v72 = vlaneseq
    %v73 = vshrl.u32 %v72, 7
    %v74 = vsub.s32 0, %v73
    %v75 = vrot.slane %v70, %v74
    %v77 = vadd.f32 %v68, %v75
    %v78 = vadd.f32 %v69, %v75
    %v79 = vpack.c.bf16 %v78, %v77
    %80 = vst.msk [vmem:[#allocation3] sm:$0xff] %vm33, %v79
    %81 = vst.msk [vmem:[#allocation2] sm:$0xff] %vm33, 0.0
    %82 = vst.msk [vmem:[#allocation2 + $0x8] sm:$0xff] %vm33, 0.0
  $region33: #{vanilla_transformer_forward.8} parent=0 // pred_fallthru
    _
  %v83 = vld [vmem:[#allocation3] sm:$0xff]
  %v84 = vld [vmem:[%s3] sm:$0xf]
  %v85 = vld [vmem:[%s3 + $0x4] sm:$0xf]
  %v86 = vld [vmem:[%s3 + $0x8] sm:$0xf]
  %v87 = vld [vmem:[%s3 + $0xc] sm:$0xf]
  %v88 = vld [vmem:[%s4] sm:$0x1]
  %v90 = vlaneseq
  %v91 = vshrl.u32 %v90, 7
  %v92 = vsub.s32 0, %v91
  %v93 = vrot.slane %v88, %v92
  %v99 = vunpack.c.l.b16 %v84
  %v100 = vunpack.c.l.b16 %v85
  %v101 = vunpack.c.l.b16 %v86
  %v102 = vunpack.c.l.b16 %v87
  %v103 = vpack.c.b16 %v100, %v99
  %v104 = vpack.c.b16 %v102, %v101
  %vm107 = vcmask 261120
  %v109 = vsel %vm107, %v83, 0
  %111 = vmatprep.subr.bf16.mxu0 0
  %112 = vmatpush1.bf16.msra.mxu0 %v103
  %113 = vmatprep.subr.bf16.mxu0 0
  %114 = vmatpush1.bf16.msra.mxu0 %v104
  %115 = vmatprep.subr.bf16.mxu0 0
  %116 = vmatpush1.bf16.msra.mxu0 0
  %117 = vmatprep.subr.bf16.mxu0 0
  %118 = vmatpush1.bf16.msra.mxu0 0
  %119 = vmatprep.subr.bf16.mxu0 0
  %120 = vmatpush1.bf16.msra.mxu0 0
  %121 = vmatprep.subr.bf16.mxu0 0
  %122 = vmatpush1.bf16.msra.mxu0 0
  %123 = vmatprep.subr.bf16.mxu0 0
  %124 = vmatpush1.bf16.msra.mxu0 0
  %125 = vmatprep.subr.bf16.mxu0 0
  %126 = vmatpush1.bf16.msra.mxu0 0
  %127 = vmatprep.subr.bf16.mxu0 0
  %128 = vmatpush1.bf16.msra.mxu0 0
  %129 = vmatprep.subr.bf16.mxu0 0
  %130 = vmatpush1.bf16.msra.mxu0 0
  %131 = vmatprep.subr.bf16.mxu0 0
  %132 = vmatpush1.bf16.msra.mxu0 0
  %133 = vmatprep.subr.bf16.mxu0 0
  %134 = vmatpush1.bf16.msra.mxu0 0
  %135 = vmatprep.subr.bf16.mxu0 0
  %136 = vmatpush1.bf16.msra.mxu0 0
  %137 = vmatprep.subr.bf16.mxu0 0
  %138 = vmatpush1.bf16.msra.mxu0 0
  %139 = vmatprep.subr.bf16.mxu0 0
  %140 = vmatpush1.bf16.msra.mxu0 0
  %141 = vmatprep.subr.bf16.mxu0 0
  %142 = vmatpush1.bf16.msra.mxu0 0
  %143 = vmatprep.mubr.bf16.mxu0 0
  %144 = vmatmul.mubr.bf16.gmra.mrb[0].mxu0 %v109
  %v145 = vpop.f32.mrb[0].mxu0
  %v146 = vadd.f32 %v93, %v145
  %v147 = vpop.f32.mrb[0].mxu0
  %v148 = vpop.f32.mrb[0].mxu0
  %v149 = vadd.f32 %v93, %v148
  %v150 = vpop.f32.mrb[0].mxu0
  %151 = vdwg.mxu0
  %v152 = vmul.f32 %v146, 0.5
  %v153 = vmul.f32 %v149, 0.5
  %v154 = vmul.f32 %v146, 0.70710677
  %v155 = vmul.f32 %v149, 0.70710677
  %v156 = verf.f32.pop %v154
  %v157 = verf.f32.pop %v155
  %v158 = vadd.f32 %v156, 1.0
  %v159 = vadd.f32 %v157, 1.0
  %v160 = vmul.f32 %v152, %v158
  %v161 = vmul.f32 %v153, %v159
  %v162 = vld [vmem:[#allocation2] sm:$0xff]
  %v163 = vld [vmem:[#allocation2 + $0x8] sm:$0xff]
  %v164 = vpack.c.bf16 %v161, %v160
  %v165 = vld [vmem:[%s5] sm:$0xf]
  %v166 = vld [vmem:[%s5 + $0x4] sm:$0xf]
  %v167 = vld [vmem:[%s5 + $0x8] sm:$0xf]
  %v168 = vld [vmem:[%s5 + $0xc] sm:$0xf]
  %v169 = vld [vmem:[%s5 + $0x10] sm:$0xf]
  %v170 = vld [vmem:[%s5 + $0x14] sm:$0xf]
  %v171 = vld [vmem:[%s5 + $0x18] sm:$0xf]
  %v172 = vld [vmem:[%s5 + $0x1c] sm:$0xf]
  %v173 = vld [vmem:[%s5 + $0x20] sm:$0xf]
  %v174 = vld [vmem:[%s5 + $0x24] sm:$0xf]
  %v175 = vld [vmem:[%s5 + $0x28] sm:$0xf]
  %v176 = vld [vmem:[%s5 + $0x2c] sm:$0xf]
  %v177 = vld [vmem:[%s5 + $0x30] sm:$0xf]
  %v178 = vld [vmem:[%s5 + $0x34] sm:$0xf]
  %v179 = vld [vmem:[%s5 + $0x38] sm:$0xf]
  %v180 = vld [vmem:[%s5 + $0x3c] sm:$0xf]
  %v197 = vunpack.c.l.b16 %v165
  %v198 = vunpack.c.l.b16 %v166
  %v199 = vunpack.c.l.b16 %v167
  %v200 = vunpack.c.l.b16 %v168
  %v201 = vunpack.c.l.b16 %v169
  %v202 = vunpack.c.l.b16 %v170
  %v203 = vunpack.c.l.b16 %v171
  %v204 = vunpack.c.l.b16 %v172
  %v205 = vunpack.c.l.b16 %v173
  %v206 = vunpack.c.l.b16 %v174
  %v207 = vunpack.c.l.b16 %v175
  %v208 = vunpack.c.l.b16 %v176
  %v209 = vunpack.c.l.b16 %v177
  %v210 = vunpack.c.l.b16 %v178
  %v211 = vunpack.c.l.b16 %v179
  %v212 = vunpack.c.l.b16 %v180
  %v213 = vpack.c.b16 %v198, %v197
  %v214 = vpack.c.b16 %v200, %v199
  %v215 = vpack.c.b16 %v202, %v201
  %v216 = vpack.c.b16 %v204, %v203
  %v217 = vpack.c.b16 %v206, %v205
  %v218 = vpack.c.b16 %v208, %v207
  %v219 = vpack.c.b16 %v210, %v209
  %v220 = vpack.c.b16 %v212, %v211
  %229 = vmatprep.subr.bf16.mxu0 0
  %230 = vmatpush1.bf16.msra.mxu0 %v213
  %231 = vmatprep.subr.bf16.mxu0 0
  %232 = vmatpush1.bf16.msra.mxu0 %v214
  %233 = vmatprep.subr.bf16.mxu0 0
  %234 = vmatpush1.bf16.msra.mxu0 %v215
  %235 = vmatprep.subr.bf16.mxu0 0
  %236 = vmatpush1.bf16.msra.mxu0 %v216
  %237 = vmatprep.subr.bf16.mxu0 0
  %238 = vmatpush1.bf16.msra.mxu0 %v217
  %239 = vmatprep.subr.bf16.mxu0 0
  %240 = vmatpush1.bf16.msra.mxu0 %v218
  %241 = vmatprep.subr.bf16.mxu0 0
  %242 = vmatpush1.bf16.msra.mxu0 %v219
  %243 = vmatprep.subr.bf16.mxu0 0
  %244 = vmatpush1.bf16.msra.mxu0 %v220
  %245 = vmatprep.subr.bf16.mxu0 0
  %246 = vmatpush1.bf16.msra.mxu0 0
  %247 = vmatprep.subr.bf16.mxu0 0
  %248 = vmatpush1.bf16.msra.mxu0 0
  %249 = vmatprep.subr.bf16.mxu0 0
  %250 = vmatpush1.bf16.msra.mxu0 0
  %251 = vmatprep.subr.bf16.mxu0 0
  %252 = vmatpush1.bf16.msra.mxu0 0
  %253 = vmatprep.subr.bf16.mxu0 0
  %254 = vmatpush1.bf16.msra.mxu0 0
  %255 = vmatprep.subr.bf16.mxu0 0
  %256 = vmatpush1.bf16.msra.mxu0 0
  %257 = vmatprep.subr.bf16.mxu0 0
  %258 = vmatpush1.bf16.msra.mxu0 0
  %259 = vmatprep.subr.bf16.mxu0 0
  %260 = vmatpush1.bf16.msra.mxu0 0
  %261 = vmatprep.mubr.bf16.mxu0 0
  %262 = vmatmul.mubr.bf16.gmra.mrb[0].mxu0 %v164
  %v263 = vpop.f32.mrb[0].mxu0
  %v264 = vadd.f32 0.0, %v263
  %v265 = vpop.f32.mrb[0].mxu0
  %v266 = vpop.f32.mrb[0].mxu0
  %v267 = vadd.f32 0.0, %v266
  %v268 = vpop.f32.mrb[0].mxu0
  %269 = vdwg.mxu0
  %v270 = vadd.f32 %v162, %v264
  %v271 = vadd.f32 %v163, %v267
  %272 = vst.msk [vmem:[#allocation2] sm:$0xff] %vm107, %v270
  %273 = vst.msk [vmem:[#allocation2 + $0x8] sm:$0xff] %vm107, %v271
  // Predicated region
  $region34: #{vanilla_transformer_forward.8} parent=0 // pred_check
    %p274 = pneg %p27
  $region35: #{vanilla_transformer_forward.8} parent=0 // pred_check_branch
    %276 = sbr.rel (%p274) target = $region37
  $region36: #{vanilla_transformer_forward.8} parent=0 // pred_region
    %v277 = vld [vmem:[%s0] sm:$0xff]
    %v278 = vld [vmem:[%s0 + $0x8] sm:$0xff]
    %v279 = vld [vmem:[#allocation2] sm:$0xff]
    %v280 = vld [vmem:[#allocation2 + $0x8] sm:$0xff]
    %v281 = vadd.f32 %v277, %v279
    %v282 = vadd.f32 %v278, %v280
    %v283 = vld [vmem:[%s6] sm:$0x1]
    %v285 = vlaneseq
    %v286 = vshrl.u32 %v285, 7
    %v287 = vsub.s32 0, %v286
    %v288 = vrot.slane %v283, %v287
    %v290 = vadd.f32 %v281, %v288
    %v291 = vadd.f32 %v282, %v288
    %292 = vst.msk [vmem:[%s7] sm:$0xff] %vm107, %v290
    %293 = vst.msk [vmem:[%s7 + $0x8] sm:$0xff] %vm107, %v291
  $region37: #{vanilla_transformer_forward.8} parent=0 // pred_fallthru
    _
  // Predicated region
  $region38: #{vanilla_transformer_forward.8} parent=0 // pred_check
    _
  $region39: #{vanilla_transformer_forward.8} parent=0 // pred_check_branch
    %295 = sbr.rel (0) target = $region41
  $region40: #{vanilla_transformer_forward.8} parent=0 // pred_region
    _
  $region41: #{vanilla_transformer_forward.8} parent=0 // pred_fallthru
    _
  // Predicated region
  $region42: #{vanilla_transformer_forward.8} parent=0 // pred_check
    _
  $region43: #{vanilla_transformer_forward.8} parent=0 // pred_check_branch
    %297 = sbr.rel (0) target = $region45
  $region44: #{vanilla_transformer_forward.8} parent=0 // pred_region
    _
  $region45: #{vanilla_transformer_forward.8} parent=0 // pred_fallthru
    _

// kernel: vanilla_transformer_forward.9
$region0: #{vanilla_transformer_forward.9}
  #allocation0 [shape = 'u32[]', space=smem, size = 0x4, offset = 0x4, fixed_abs, tag = 'smem constant byte address 0x4 - core index']
  #allocation1 [shape = 'u32[144,128]{1,0:T(1,128)}', space=vmem, size = 0x12000, scoped, tag = 'internal scratch']
  #allocation2 [shape = 'bf16[16,32]{1,0:T(16,128)(2,1)}', space=vmem, size = 0x1000, scoped, tag = 'scratch operand']
  %s0 = inlined_call_operand.vmem [shape: f32[16,32], index: 0, kind: input, shape index: {}]
  %s1 = inlined_call_operand.vmem [shape: f32[1,32], index: 1, kind: input, shape index: {}]
  %s2 = inlined_call_operand.vmem [shape: f32[1,32], index: 2, kind: input, shape index: {}]
  %s3 = inlined_call_operand.vmem [shape: bf16[32,64], index: 3, kind: input, shape index: {}]
  %s4 = inlined_call_operand.vmem [shape: f32[1,64], index: 4, kind: input, shape index: {}]
  %s5 = inlined_call_operand.hbm [shape: f32[16,64], index: 5, kind: output, shape index: {}]
  %s6 = sld [smem:[#allocation0]]
  $region34: #{vanilla_transformer_forward.9} parent=0
    _
  %s8 = ssub.s32 1, %s6
  %s9 = scalar_select 0, %s8, %s6
  $region1: #{vanilla_transformer_forward.9} parent=0
    #allocation3 [shape = 'u8[8192]{0}', space=vmem, size = 0x2000, scoped, tag = 'output window, operand 0, single buffered']
    #allocation4 [shape = 's32[1]{0}', space=sflag, size = 0x4, scoped, tag = 'scoped memory for vanilla_transformer_forward.9']
    %10 = vsyncpa [#allocation4], 0
    // Predicated region
    $region2: #{vanilla_transformer_forward.9} parent=1 // pred_check
      _
    $region3: #{vanilla_transformer_forward.9} parent=1 // pred_check_branch
      %12 = sbr.rel (0) target = $region5
    $region4: #{vanilla_transformer_forward.9} parent=1 // pred_region
      _
    $region5: #{vanilla_transformer_forward.9} parent=1 // pred_fallthru
      _
    // Predicated region
    $region6: #{vanilla_transformer_forward.9} parent=1 // pred_check
      _
    $region7: #{vanilla_transformer_forward.9} parent=1 // pred_check_branch
      %14 = sbr.rel (0) target = $region9
    $region8: #{vanilla_transformer_forward.9} parent=1 // pred_region
      _
    $region9: #{vanilla_transformer_forward.9} parent=1 // pred_fallthru
      _
    // Predicated region
    $region10: #{vanilla_transformer_forward.9} parent=1 // pred_check
      _
    $region11: #{vanilla_transformer_forward.9} parent=1 // pred_check_branch
      %16 = sbr.rel (0) target = $region13
    $region12: #{vanilla_transformer_forward.9} parent=1 // pred_region
      _
    $region13: #{vanilla_transformer_forward.9} parent=1 // pred_fallthru
      _
    // Predicated region
    $region14: #{vanilla_transformer_forward.9} parent=1 // pred_check
      _
    $region15: #{vanilla_transformer_forward.9} parent=1 // pred_check_branch
      %18 = sbr.rel (0) target = $region17
    $region16: #{vanilla_transformer_forward.9} parent=1 // pred_region
      _
    $region17: #{vanilla_transformer_forward.9} parent=1 // pred_fallthru
      _
    // Predicated region
    $region18: #{vanilla_transformer_forward.9} parent=1 // pred_check
      _
    $region19: #{vanilla_transformer_forward.9} parent=1 // pred_check_branch
      %20 = sbr.rel (0) target = $region21
    $region20: #{vanilla_transformer_forward.9} parent=1 // pred_region
      _
    $region21: #{vanilla_transformer_forward.9} parent=1 // pred_fallthru
      _
    %p22 = scmp.eq.s32.totalorder 0, 0
    // Predicated region
    $region22: #{vanilla_transformer_forward.9} parent=1 // pred_check
      %p23 = pneg %p22
    $region23: #{vanilla_transformer_forward.9} parent=1 // pred_check_branch
      %25 = sbr.rel (%p23) target = $region25
    $region24: #{vanilla_transformer_forward.9} parent=1 // pred_region
      %v26 = vld [vmem:[%s0] sm:$0xff]
      %v27 = vld [vmem:[%s0 + $0x8] sm:$0xff]
      %vm28 = vcmask 261120
      %v29 = vsel %vm28, %v26, 0.0
      %30 = vadd.xlane.f32.xlu0 %v29
      %v31 = vpop.xlane.xlu0 %30
      %v32 = vsel %vm28, %v27, 0.0
      %33 = vadd.xlane.f32.xlu0 %v32
      %v34 = vpop.xlane.xlu0 %33
      %v35 = vrcp.pop 32.0
      %v36 = vmul.f32 %v31, %v35
      %v37 = vmul.f32 %v34, %v35
      %v38 = vsub.f32 %v26, %v36
      %v39 = vsub.f32 %v27, %v37
      %v40 = vmul.f32 %v38, %v38
      %v41 = vmul.f32 %v39, %v39
      %v42 = vsel %vm28, %v40, 0.0
      %43 = vadd.xlane.f32.xlu0 %v42
      %v44 = vpop.xlane.xlu0 %43
      %v45 = vsel %vm28, %v41, 0.0
      %46 = vadd.xlane.f32.xlu0 %v45
      %v47 = vpop.xlane.xlu0 %46
      %v48 = vmul.f32 %v44, %v35
      %v49 = vmul.f32 %v47, %v35
      %v50 = vadd.f32 %v48, 1e-05
      %v51 = vadd.f32 %v49, 1e-05
      %v52 = vrsqrt.pop %v50
      %v53 = vrsqrt.pop %v51
      %v54 = vmul.f32 %v38, %v52
      %v55 = vmul.f32 %v39, %v53
      %v56 = vld [vmem:[%s1] sm:$0x1]
      %v58 = vlaneseq
      %v59 = vshrl.u32 %v58, 7
      %v60 = vsub.s32 0, %v59
      %v61 = vrot.slane %v56, %v60
      %v63 = vmul.f32 %v54, %v61
      %v64 = vmul.f32 %v55, %v61
      %v65 = vld [vmem:[%s2] sm:$0x1]
      %v67 = vlaneseq
      %v68 = vshrl.u32 %v67, 7
      %v69 = vsub.s32 0, %v68
      %v70 = vrot.slane %v65, %v69
      %v72 = vadd.f32 %v63, %v70
      %v73 = vadd.f32 %v64, %v70
      %v74 = vpack.c.bf16 %v73, %v72
      %75 = vst.msk [vmem:[#allocation2] sm:$0xff] %vm28, %v74
    $region25: #{vanilla_transformer_forward.9} parent=1 // pred_fallthru
      _
    %v76 = vld [vmem:[#allocation2] sm:$0xff]
    %v77 = vld [vmem:[%s3] sm:$0xf]
    %v78 = vld [vmem:[%s3 + $0x4] sm:$0xf]
    %v79 = vld [vmem:[%s3 + $0x8] sm:$0xf]
    %v80 = vld [vmem:[%s3 + $0xc] sm:$0xf]
    %v81 = vld [vmem:[%s4] sm:$0x1]
    %v83 = vlaneseq
    %v84 = vshrl.u32 %v83, 7
    %v85 = vsub.s32 0, %v84
    %v86 = vrot.slane %v81, %v85
    %v92 = vunpack.c.l.b16 %v77
    %v93 = vunpack.c.l.b16 %v78
    %v94 = vunpack.c.l.b16 %v79
    %v95 = vunpack.c.l.b16 %v80
    %v96 = vpack.c.b16 %v93, %v92
    %v97 = vpack.c.b16 %v95, %v94
    %vm100 = vcmask 261120
    %v102 = vsel %vm100, %v76, 0
    %104 = vmatprep.subr.bf16.mxu0 0
    %105 = vmatpush1.bf16.msra.mxu0 %v96
    %106 = vmatprep.subr.bf16.mxu0 0
    %107 = vmatpush1.bf16.msra.mxu0 %v97
    %108 = vmatprep.subr.bf16.mxu0 0
    %109 = vmatpush1.bf16.msra.mxu0 0
    %110 = vmatprep.subr.bf16.mxu0 0
    %111 = vmatpush1.bf16.msra.mxu0 0
    %112 = vmatprep.subr.bf16.mxu0 0
    %113 = vmatpush1.bf16.msra.mxu0 0
    %114 = vmatprep.subr.bf16.mxu0 0
    %115 = vmatpush1.bf16.msra.mxu0 0
    %116 = vmatprep.subr.bf16.mxu0 0
    %117 = vmatpush1.bf16.msra.mxu0 0
    %118 = vmatprep.subr.bf16.mxu0 0
    %119 = vmatpush1.bf16.msra.mxu0 0
    %120 = vmatprep.subr.bf16.mxu0 0
    %121 = vmatpush1.bf16.msra.mxu0 0
    %122 = vmatprep.subr.bf16.mxu0 0
    %123 = vmatpush1.bf16.msra.mxu0 0
    %124 = vmatprep.subr.bf16.mxu0 0
    %125 = vmatpush1.bf16.msra.mxu0 0
    %126 = vmatprep.subr.bf16.mxu0 0
    %127 = vmatpush1.bf16.msra.mxu0 0
    %128 = vmatprep.subr.bf16.mxu0 0
    %129 = vmatpush1.bf16.msra.mxu0 0
    %130 = vmatprep.subr.bf16.mxu0 0
    %131 = vmatpush1.bf16.msra.mxu0 0
    %132 = vmatprep.subr.bf16.mxu0 0
    %133 = vmatpush1.bf16.msra.mxu0 0
    %134 = vmatprep.subr.bf16.mxu0 0
    %135 = vmatpush1.bf16.msra.mxu0 0
    %136 = vmatprep.mubr.bf16.mxu0 0
    %137 = vmatmul.mubr.bf16.gmra.mrb[0].mxu0 %v102
    %v138 = vpop.f32.mrb[0].mxu0
    %v139 = vadd.f32 %v86, %v138
    %v140 = vpop.f32.mrb[0].mxu0
    %v141 = vpop.f32.mrb[0].mxu0
    %v142 = vadd.f32 %v86, %v141
    %v143 = vpop.f32.mrb[0].mxu0
    %144 = vdwg.mxu0
    %vm145 = vcmask 523264
    %146 = vst.msk [vmem:[#allocation3] sm:$0xff] %vm145, %v139
    %147 = vst.msk [vmem:[#allocation3 + $0x8] sm:$0xff] %vm145, %v142
    // Predicated region
    $region26: #{vanilla_transformer_forward.9} parent=1 // pred_check
      _
    $region27: #{vanilla_transformer_forward.9} parent=1 // pred_check_branch
      %149 = sbr.rel (0) target = $region29
    $region28: #{vanilla_transformer_forward.9} parent=1 // pred_region
      %s151 = ssub.s32 256, 256
      %152 = vsyncadd [#allocation4], %s151
      %s153 = sshll.u32 [#allocation3], 4
      %s154 = int_to_ptr.vmem [resolvable:$true] %s153
      %159 = dma.vmem_to_hbm [thread:$0]  %s154, 256, %s5, [#allocation4], 128, 128, 8
    $region29: #{vanilla_transformer_forward.9} parent=1 // pred_fallthru
      _
    // Predicated region
    $region30: #{vanilla_transformer_forward.9} parent=1 // pred_check
      _
    $region31: #{vanilla_transformer_forward.9} parent=1 // pred_check_branch
      %161 = sbr.rel (0) target = $region33
    $region32: #{vanilla_transformer_forward.9} parent=1 // pred_region
      %162 = dma.done [#allocation4], 256
    $region33: #{vanilla_transformer_forward.9} parent=1 // pred_fallthru
      _
    %163 = vsyncpa [#allocation4], 1

</llo_original>
